<compile_context>
chip_gen: v5e
topology: v5e:2x2
jax: 0.10.0
libtpu: 0.0.40
codegen_flags: <defaults>
</compile_context>

<pallas_src>
import numpy as np

import jax
import jax.numpy as jnp
from jax.experimental import pallas as pl
from jax.experimental.pallas import tpu as pltpu

_LANE = 128  # param blob lane width (max channel count is 128)


# ----------------------------- Pallas kernel -------------------------------

def _disc_kernel(p0_ref, w0_ref, w1_ref, w2_ref, w3_ref,
                 s1_ref, s2_ref, s3_ref, blob_ref, out_ref):
    """One grid step == one image. Whole conv chain + adv head in VMEM."""
    blob = blob_ref[...]                                   # (14, 128) packed params
    w_refs = (w0_ref, w1_ref, w2_ref, w3_ref)
    s_refs = (None, s1_ref, s2_ref, s3_ref)

    # Layer-0 patches were built lane-dense in the wrapper (im2col, no S_0).
    x = p0_ref[0]                                          # (Ho0*Wo0, 9*Cin0)

    for l in range(4):
        w = w_refs[l][...]                                 # (9*Cin, Cout), tap-major rows
        cout = w.shape[1]
        if l > 0:
            # Tiny per-image 0/1 gathers (one per tap), folded into the K dim
            # of a single weight matmul via a lane concat.
            s = s_refs[l][...]                             # (9, M_out, M_in)
            x = jnp.concatenate(
                [jnp.dot(s[t], x, preferred_element_type=jnp.float32)
                 for t in range(9)], axis=-1)              # (M_out, 9*Cin)
        y = jnp.dot(x, w, preferred_element_type=jnp.float32)   # single conv matmul
        b = blob[3 * l + 0:3 * l + 1, :cout]
        sc = blob[3 * l + 1:3 * l + 2, :cout]
        sh = blob[3 * l + 2:3 * l + 3, :cout]
        y = y + b                                          # conv bias
        y = jnp.where(y > 0, y, 0.2 * y)                   # LeakyReLU(0.2)
        # Dropout2d(0.25): identity in eval mode.
        y = y * sc + sh                                    # folded eval BatchNorm (identity l=0)
        x = y

    # adv head: Linear(C -> 1) as VPU row-dot + numerically stable sigmoid.
    c_final = x.shape[1]
    wh = blob[12:13, :c_final]
    bh = blob[13:14, 0:1]
    z = jnp.sum(x * wh, axis=-1, keepdims=True) + bh       # (1, 1)
    ez = jnp.exp(-jnp.abs(z))
    sig = jnp.where(z >= 0.0, 1.0 / (1.0 + ez), ez / (1.0 + ez))
    out_ref[0] = sig.astype(out_ref.dtype)


# ------------------------------ JAX glue ------------------------------------

def _build_gather_stack(h, w, k=3, stride=2, pad=1):
    """Per-image 0/1 gather matrices, stacked over the 9 taps.

    s[t, oh*wo+ow, ih*w+iw] = 1 where (ih, iw) is the tap-t input pixel of
    output pixel (oh, ow); padding taps stay all-zero rows.
    """
    ho = (h + 2 * pad - k) // stride + 1
    wo = (w + 2 * pad - k) // stride + 1
    s = np.zeros((k * k, ho * wo, h * w), dtype=np.float32)
    for di in range(k):
        for dj in range(k):
            t = di * k + dj
            for oh in range(ho):
                ih = oh * stride + di - pad
                if ih < 0 or ih >= h:
                    continue
                for ow in range(wo):
                    iw = ow * stride + dj - pad
                    if iw < 0 or iw >= w:
                        continue
                    s[t, oh * wo + ow, ih * w + iw] = 1.0
    return s, ho, wo


def init_params(key, img_channel=4, img_size=16):
    params = {"conv": []}
    in_dim = img_channel
    out_dim = 16
    eps = 1e-5
    for i in range(4):
        key, k1, k2, k3, k4, k5, k6 = jax.random.split(key, 7)
        # Conv weight stored as (9, Cin, Cout): tap-major, HWIO-compatible.
        w = jax.random.normal(k1, (9, in_dim, out_dim), jnp.float32) * 0.05
        b = jax.random.normal(k2, (out_dim,), jnp.float32) * 0.05
        if i != 0:  # BatchNorm2d only for blocks 1..3 (eval mode, folded)
            gamma = jax.random.uniform(k3, (out_dim,), jnp.float32, 0.5, 1.5)
            beta = jax.random.normal(k4, (out_dim,), jnp.float32) * 0.1
            run_mean = jax.random.normal(k5, (out_dim,), jnp.float32) * 0.1
            run_var = jax.random.uniform(k6, (out_dim,), jnp.float32, 0.5, 1.5)
            bn_scale = gamma / jnp.sqrt(run_var + eps)
            bn_shift = beta - run_mean * bn_scale
        else:
            bn_scale = jnp.ones((out_dim,), jnp.float32)
            bn_shift = jnp.zeros((out_dim,), jnp.float32)
        params["conv"].append(dict(w=w, b=b, bn_scale=bn_scale, bn_shift=bn_shift))
        in_dim = out_dim
        out_dim *= 2
    out_dim //= 2
    out_size = img_size // (2 ** 4)
    key, k1, k2 = jax.random.split(key, 3)
    params["head"] = dict(
        w=jax.random.normal(k1, (out_dim * out_size * out_size, 1), jnp.float32) * 0.05,
        b=jax.random.normal(k2, (1,), jnp.float32) * 0.05,
    )
    return params


def discriminator_forward(x_nchw, params):
    n, c, h, w = x_nchw.shape
    x_nhwc = jnp.transpose(x_nchw.astype(jnp.float32), (0, 2, 3, 1))

    # ---- layer-0 im2col in the wrapper: (N, Ho*Wo, 9*Cin) lane-dense patches
    ho, wo = h // 2, w // 2
    xp = jnp.pad(x_nhwc, ((0, 0), (1, 1), (1, 1), (0, 0)))
    taps = [xp[:, di:di + 2 * ho:2, dj:dj + 2 * wo:2, :]
            for di in range(3) for dj in range(3)]
    patches0 = jnp.stack(taps, axis=3).reshape(n, ho * wo, 9 * c)

    # ---- conv weights flattened tap-major: (9*Cin, Cout), one dot per layer
    w_flats = [layer["w"].reshape(-1, layer["w"].shape[2]).astype(jnp.float32)
               for layer in params["conv"]]

    # ---- tiny per-image gather stacks for layers 1..3 (no batch block-diag)
    s_stacks = []
    cur_h, cur_w = ho, wo
    for _ in params["conv"][1:]:
        s_np, nh, nw = _build_gather_stack(cur_h, cur_w)
        s_stacks.append(jnp.asarray(s_np))
        cur_h, cur_w = nh, nw
    # Final spatial size must be 1x1 so NHWC and NCHW flatten coincide and the
    # adv head is a pure per-channel row-dot.
    assert cur_h == 1 and cur_w == 1, "adv head assumes img_size // 2**4 == 1"
    c_final = params["conv"][-1]["w"].shape[2]

    # ---- one packed param blob: [b, bn_scale, bn_shift] x 4 layers + head
    rows = []
    for layer in params["conv"]:
        cout = layer["w"].shape[2]
        rows.append(jnp.pad(layer["b"].astype(jnp.float32), (0, _LANE - cout)))
        rows.append(jnp.pad(layer["bn_scale"].astype(jnp.float32), (0, _LANE - cout)))
        rows.append(jnp.pad(layer["bn_shift"].astype(jnp.float32), (0, _LANE - cout)))
    rows.append(jnp.pad(params["head"]["w"].reshape(-1).astype(jnp.float32),
                        (0, _LANE - c_final)))
    rows.append(jnp.pad(params["head"]["b"].reshape(-1).astype(jnp.float32),
                        (0, _LANE - 1)))
    blob = jnp.stack(rows, axis=0)                          # (14, 128)

    # ---- cost estimate (reflects the restructured, mostly-dense math)
    flops = 2 * (ho * wo) * (9 * c) * params["conv"][0]["w"].shape[2]
    for s_arr, layer in zip(s_stacks, params["conv"][1:]):
        _, m_out, m_in = s_arr.shape
        _, cin, cout = layer["w"].shape
        flops += 9 * 2 * m_out * m_in * cin + 2 * m_out * 9 * cin * cout
    flops += 2 * c_final
    flops *= n
    bytes_accessed = sum(int(np.prod(a.shape)) * 4
                         for a in ([patches0] + w_flats + s_stacks + [blob])) + n * 4

    def _resident(arr):
        nd = arr.ndim
        return pl.BlockSpec(arr.shape, lambda i, _nd=nd: (0,) * _nd)

    in_specs = ([pl.BlockSpec((1, ho * wo, 9 * c), lambda i: (i, 0, 0))]
                + [_resident(a) for a in w_flats]
                + [_resident(a) for a in s_stacks]
                + [_resident(blob)])

    out = pl.pallas_call(
        _disc_kernel,
        out_shape=jax.ShapeDtypeStruct((n, 1, 1), jnp.float32),
        grid=(n,),                                   # batch axis: parallel (v7x 2 TCs)
        in_specs=in_specs,
        out_specs=pl.BlockSpec((1, 1, 1), lambda i: (i, 0, 0)),
        compiler_params=pltpu.CompilerParams(
            dimension_semantics=("parallel",),
        ),
        cost_estimate=pl.CostEstimate(
            flops=int(flops),
            transcendentals=int(n),
            bytes_accessed=int(bytes_accessed),
        ),
    )(patches0, *w_flats, *s_stacks, blob)
    return out.reshape(n, 1)


# Pure-JAX reference (same math via lax.conv) used only to validate the kernel.
def reference_forward(x_nchw, params):
    x = jnp.transpose(x_nchw.astype(jnp.float32), (0, 2, 3, 1))
    for layer in params["conv"]:
        _, cin, cout = layer["w"].shape
        w_hwio = layer["w"].reshape(3, 3, cin, cout)
        y = jax.lax.conv_general_dilated(
            x, w_hwio, window_strides=(2, 2), padding=((1, 1), (1, 1)),
            dimension_numbers=("NHWC", "HWIO", "NHWC"))
        y = y + layer["b"]
        y = jnp.where(y > 0, y, 0.2 * y)
        y = y * layer["bn_scale"] + layer["bn_shift"]
        x = y
    flat = jnp.transpose(x, (0, 3, 1, 2)).reshape(x.shape[0], -1)
    out = flat @ params["head"]["w"] + params["head"]["b"]
    return jax.nn.sigmoid(out)


if __name__ == "__main__":
    key = jax.random.PRNGKey(0)
    key, pkey, xkey = jax.random.split(key, 3)

    img_channel, img_size, batch = 4, 16, 2
    params = init_params(pkey, img_channel=img_channel, img_size=img_size)
    x = jax.random.normal(xkey, (batch, img_channel, img_size, img_size),
                          jnp.float32)

    fwd = jax.jit(discriminator_forward)
    out = jax.block_until_ready(fwd(x, params))
    assert out.shape == (batch, 1), out.shape

    ref = jax.block_until_ready(reference_forward(x, params))
    assert jnp.allclose(out, ref, atol=1e-4, rtol=1e-4), (out, ref)

    print("KERNEL_OK")
</pallas_src>

<mosaic_0001>
module attributes {stable_mosaic.version = 11 : i64} {
  func.func @_disc_kernel(%arg0: i32, %arg1: memref<1x64x36xf32, #tpu.memory_space<vmem>>, %arg2: memref<36x16xf32, #tpu.memory_space<vmem>>, %arg3: memref<144x32xf32, #tpu.memory_space<vmem>>, %arg4: memref<288x64xf32, #tpu.memory_space<vmem>>, %arg5: memref<576x128xf32, #tpu.memory_space<vmem>>, %arg6: memref<9x16x64xf32, #tpu.memory_space<vmem>>, %arg7: memref<9x4x16xf32, #tpu.memory_space<vmem>>, %arg8: memref<9x1x4xf32, #tpu.memory_space<vmem>>, %arg9: memref<14x128xf32, #tpu.memory_space<vmem>>, %arg10: memref<1x1x1xf32, #tpu.memory_space<vmem>>) attributes {dimension_semantics = [#tpu.dimension_semantics<parallel>], iteration_bounds = array<i64: 2>, scalar_prefetch = 0 : i64, scratch_operands = 0 : i64, tpu.core_type = #tpu.core_type<tc>, window_params = [{transform_indices = @transform_0, window_bounds = array<i64: 1, 64, 36>}, {pipeline_mode = #tpu.pipeline_mode<synchronous>, transform_indices = @transform_1, window_bounds = array<i64: 36, 16>}, {pipeline_mode = #tpu.pipeline_mode<synchronous>, transform_indices = @transform_2, window_bounds = array<i64: 144, 32>}, {pipeline_mode = #tpu.pipeline_mode<synchronous>, transform_indices = @transform_3, window_bounds = array<i64: 288, 64>}, {pipeline_mode = #tpu.pipeline_mode<synchronous>, transform_indices = @transform_4, window_bounds = array<i64: 576, 128>}, {pipeline_mode = #tpu.pipeline_mode<synchronous>, transform_indices = @transform_5, window_bounds = array<i64: 9, 16, 64>}, {pipeline_mode = #tpu.pipeline_mode<synchronous>, transform_indices = @transform_6, window_bounds = array<i64: 9, 4, 16>}, {pipeline_mode = #tpu.pipeline_mode<synchronous>, transform_indices = @transform_7, window_bounds = array<i64: 9, 1, 4>}, {pipeline_mode = #tpu.pipeline_mode<synchronous>, transform_indices = @transform_8, window_bounds = array<i64: 14, 128>}, {transform_indices = @transform_9, window_bounds = array<i64: 1, 1, 1>}]} {
    %c0 = arith.constant 0 : index
    %c0_0 = arith.constant 0 : index
    %0 = vector.load %arg9[%c0, %c0_0] : memref<14x128xf32, #tpu.memory_space<vmem>>, vector<14x128xf32>
    %c0_1 = arith.constant 0 : index
    %c0_2 = arith.constant 0 : index
    %c0_3 = arith.constant 0 : index
    %1 = vector.load %arg1[%c0_1, %c0_2, %c0_3] : memref<1x64x36xf32, #tpu.memory_space<vmem>>, vector<1x64x36xf32>
    %2 = vector.shape_cast %1 : vector<1x64x36xf32> to vector<64x36xf32>
    %c0_4 = arith.constant 0 : index
    %c0_5 = arith.constant 0 : index
    %3 = vector.load %arg2[%c0_4, %c0_5] : memref<36x16xf32, #tpu.memory_space<vmem>>, vector<36x16xf32>
    %cst = arith.constant dense<0.000000e+00> : vector<64x16xf32>
    %4 = tpu.matmul %2, %3, %cst {dimension_numbers = #tpu.dot_dimension_numbers<[1], [0], [0], [1], [0, 0, 1, 1], [], []>} : vector<64x36xf32>, vector<36x16xf32>, vector<64x16xf32> -> vector<64x16xf32>
    %5 = vector.extract_strided_slice %0 {offsets = [0, 0], sizes = [1, 16], strides = [1, 1]} : vector<14x128xf32> to vector<1x16xf32>
    %6 = vector.extract_strided_slice %0 {offsets = [1, 0], sizes = [1, 16], strides = [1, 1]} : vector<14x128xf32> to vector<1x16xf32>
    %7 = vector.extract_strided_slice %0 {offsets = [2, 0], sizes = [1, 16], strides = [1, 1]} : vector<14x128xf32> to vector<1x16xf32>
    %8 = vector.broadcast %5 : vector<1x16xf32> to vector<64x16xf32>
    %9 = arith.addf %4, %8 : vector<64x16xf32>
    %cst_6 = arith.constant 0.000000e+00 : f32
    %10 = vector.broadcast %cst_6 : f32 to vector<64x16xf32>
    %11 = arith.cmpf ogt, %9, %10 : vector<64x16xf32>
    %cst_7 = arith.constant 2.000000e-01 : f32
    %12 = vector.broadcast %cst_7 : f32 to vector<64x16xf32>
    %13 = arith.mulf %12, %9 : vector<64x16xf32>
    %14 = arith.select %11, %9, %13 : vector<64x16xi1>, vector<64x16xf32>
    %15 = vector.broadcast %6 : vector<1x16xf32> to vector<64x16xf32>
    %16 = arith.mulf %14, %15 : vector<64x16xf32>
    %17 = vector.broadcast %7 : vector<1x16xf32> to vector<64x16xf32>
    %18 = arith.addf %16, %17 : vector<64x16xf32>
    %c0_8 = arith.constant 0 : index
    %c0_9 = arith.constant 0 : index
    %19 = vector.load %arg3[%c0_8, %c0_9] : memref<144x32xf32, #tpu.memory_space<vmem>>, vector<144x32xf32>
    %c0_10 = arith.constant 0 : index
    %c0_11 = arith.constant 0 : index
    %c0_12 = arith.constant 0 : index
    %20 = vector.load %arg6[%c0_10, %c0_11, %c0_12] : memref<9x16x64xf32, #tpu.memory_space<vmem>>, vector<9x16x64xf32>
    %21 = vector.extract_strided_slice %20 {offsets = [0, 0, 0], sizes = [1, 16, 64], strides = [1, 1, 1]} : vector<9x16x64xf32> to vector<1x16x64xf32>
    %22 = vector.shape_cast %21 : vector<1x16x64xf32> to vector<16x64xf32>
    %cst_13 = arith.constant dense<0.000000e+00> : vector<16x16xf32>
    %23 = tpu.matmul %22, %18, %cst_13 {dimension_numbers = #tpu.dot_dimension_numbers<[1], [0], [0], [1], [0, 0, 1, 1], [], []>} : vector<16x64xf32>, vector<64x16xf32>, vector<16x16xf32> -> vector<16x16xf32>
    %24 = vector.extract_strided_slice %20 {offsets = [1, 0, 0], sizes = [1, 16, 64], strides = [1, 1, 1]} : vector<9x16x64xf32> to vector<1x16x64xf32>
    %25 = vector.shape_cast %24 : vector<1x16x64xf32> to vector<16x64xf32>
    %cst_14 = arith.constant dense<0.000000e+00> : vector<16x16xf32>
    %26 = tpu.matmul %25, %18, %cst_14 {dimension_numbers = #tpu.dot_dimension_numbers<[1], [0], [0], [1], [0, 0, 1, 1], [], []>} : vector<16x64xf32>, vector<64x16xf32>, vector<16x16xf32> -> vector<16x16xf32>
    %27 = vector.extract_strided_slice %20 {offsets = [2, 0, 0], sizes = [1, 16, 64], strides = [1, 1, 1]} : vector<9x16x64xf32> to vector<1x16x64xf32>
    %28 = vector.shape_cast %27 : vector<1x16x64xf32> to vector<16x64xf32>
    %cst_15 = arith.constant dense<0.000000e+00> : vector<16x16xf32>
    %29 = tpu.matmul %28, %18, %cst_15 {dimension_numbers = #tpu.dot_dimension_numbers<[1], [0], [0], [1], [0, 0, 1, 1], [], []>} : vector<16x64xf32>, vector<64x16xf32>, vector<16x16xf32> -> vector<16x16xf32>
    %30 = vector.extract_strided_slice %20 {offsets = [3, 0, 0], sizes = [1, 16, 64], strides = [1, 1, 1]} : vector<9x16x64xf32> to vector<1x16x64xf32>
    %31 = vector.shape_cast %30 : vector<1x16x64xf32> to vector<16x64xf32>
    %cst_16 = arith.constant dense<0.000000e+00> : vector<16x16xf32>
    %32 = tpu.matmul %31, %18, %cst_16 {dimension_numbers = #tpu.dot_dimension_numbers<[1], [0], [0], [1], [0, 0, 1, 1], [], []>} : vector<16x64xf32>, vector<64x16xf32>, vector<16x16xf32> -> vector<16x16xf32>
    %33 = vector.extract_strided_slice %20 {offsets = [4, 0, 0], sizes = [1, 16, 64], strides = [1, 1, 1]} : vector<9x16x64xf32> to vector<1x16x64xf32>
    %34 = vector.shape_cast %33 : vector<1x16x64xf32> to vector<16x64xf32>
    %cst_17 = arith.constant dense<0.000000e+00> : vector<16x16xf32>
    %35 = tpu.matmul %34, %18, %cst_17 {dimension_numbers = #tpu.dot_dimension_numbers<[1], [0], [0], [1], [0, 0, 1, 1], [], []>} : vector<16x64xf32>, vector<64x16xf32>, vector<16x16xf32> -> vector<16x16xf32>
    %36 = vector.extract_strided_slice %20 {offsets = [5, 0, 0], sizes = [1, 16, 64], strides = [1, 1, 1]} : vector<9x16x64xf32> to vector<1x16x64xf32>
    %37 = vector.shape_cast %36 : vector<1x16x64xf32> to vector<16x64xf32>
    %cst_18 = arith.constant dense<0.000000e+00> : vector<16x16xf32>
    %38 = tpu.matmul %37, %18, %cst_18 {dimension_numbers = #tpu.dot_dimension_numbers<[1], [0], [0], [1], [0, 0, 1, 1], [], []>} : vector<16x64xf32>, vector<64x16xf32>, vector<16x16xf32> -> vector<16x16xf32>
    %39 = vector.extract_strided_slice %20 {offsets = [6, 0, 0], sizes = [1, 16, 64], strides = [1, 1, 1]} : vector<9x16x64xf32> to vector<1x16x64xf32>
    %40 = vector.shape_cast %39 : vector<1x16x64xf32> to vector<16x64xf32>
    %cst_19 = arith.constant dense<0.000000e+00> : vector<16x16xf32>
    %41 = tpu.matmul %40, %18, %cst_19 {dimension_numbers = #tpu.dot_dimension_numbers<[1], [0], [0], [1], [0, 0, 1, 1], [], []>} : vector<16x64xf32>, vector<64x16xf32>, vector<16x16xf32> -> vector<16x16xf32>
    %42 = vector.extract_strided_slice %20 {offsets = [7, 0, 0], sizes = [1, 16, 64], strides = [1, 1, 1]} : vector<9x16x64xf32> to vector<1x16x64xf32>
    %43 = vector.shape_cast %42 : vector<1x16x64xf32> to vector<16x64xf32>
    %cst_20 = arith.constant dense<0.000000e+00> : vector<16x16xf32>
    %44 = tpu.matmul %43, %18, %cst_20 {dimension_numbers = #tpu.dot_dimension_numbers<[1], [0], [0], [1], [0, 0, 1, 1], [], []>} : vector<16x64xf32>, vector<64x16xf32>, vector<16x16xf32> -> vector<16x16xf32>
    %45 = vector.extract_strided_slice %20 {offsets = [8, 0, 0], sizes = [1, 16, 64], strides = [1, 1, 1]} : vector<9x16x64xf32> to vector<1x16x64xf32>
    %46 = vector.shape_cast %45 : vector<1x16x64xf32> to vector<16x64xf32>
    %cst_21 = arith.constant dense<0.000000e+00> : vector<16x16xf32>
    %47 = tpu.matmul %46, %18, %cst_21 {dimension_numbers = #tpu.dot_dimension_numbers<[1], [0], [0], [1], [0, 0, 1, 1], [], []>} : vector<16x64xf32>, vector<64x16xf32>, vector<16x16xf32> -> vector<16x16xf32>
    %48 = tpu.concatenate %23, %26, %29, %32, %35, %38, %41, %44, %47 in 1 : vector<16x16xf32>, vector<16x16xf32>, vector<16x16xf32>, vector<16x16xf32>, vector<16x16xf32>, vector<16x16xf32>, vector<16x16xf32>, vector<16x16xf32>, vector<16x16xf32> -> vector<16x144xf32>
    %cst_22 = arith.constant dense<0.000000e+00> : vector<16x32xf32>
    %49 = tpu.matmul %48, %19, %cst_22 {dimension_numbers = #tpu.dot_dimension_numbers<[1], [0], [0], [1], [0, 0, 1, 1], [], []>} : vector<16x144xf32>, vector<144x32xf32>, vector<16x32xf32> -> vector<16x32xf32>
    %50 = vector.extract_strided_slice %0 {offsets = [3, 0], sizes = [1, 32], strides = [1, 1]} : vector<14x128xf32> to vector<1x32xf32>
    %51 = vector.extract_strided_slice %0 {offsets = [4, 0], sizes = [1, 32], strides = [1, 1]} : vector<14x128xf32> to vector<1x32xf32>
    %52 = vector.extract_strided_slice %0 {offsets = [5, 0], sizes = [1, 32], strides = [1, 1]} : vector<14x128xf32> to vector<1x32xf32>
    %53 = vector.broadcast %50 : vector<1x32xf32> to vector<16x32xf32>
    %54 = arith.addf %49, %53 : vector<16x32xf32>
    %cst_23 = arith.constant 0.000000e+00 : f32
    %55 = vector.broadcast %cst_23 : f32 to vector<16x32xf32>
    %56 = arith.cmpf ogt, %54, %55 : vector<16x32xf32>
    %cst_24 = arith.constant 2.000000e-01 : f32
    %57 = vector.broadcast %cst_24 : f32 to vector<16x32xf32>
    %58 = arith.mulf %57, %54 : vector<16x32xf32>
    %59 = arith.select %56, %54, %58 : vector<16x32xi1>, vector<16x32xf32>
    %60 = vector.broadcast %51 : vector<1x32xf32> to vector<16x32xf32>
    %61 = arith.mulf %59, %60 : vector<16x32xf32>
    %62 = vector.broadcast %52 : vector<1x32xf32> to vector<16x32xf32>
    %63 = arith.addf %61, %62 : vector<16x32xf32>
    %c0_25 = arith.constant 0 : index
    %c0_26 = arith.constant 0 : index
    %64 = vector.load %arg4[%c0_25, %c0_26] : memref<288x64xf32, #tpu.memory_space<vmem>>, vector<288x64xf32>
    %c0_27 = arith.constant 0 : index
    %c0_28 = arith.constant 0 : index
    %c0_29 = arith.constant 0 : index
    %65 = vector.load %arg7[%c0_27, %c0_28, %c0_29] : memref<9x4x16xf32, #tpu.memory_space<vmem>>, vector<9x4x16xf32>
    %66 = vector.extract_strided_slice %65 {offsets = [0, 0, 0], sizes = [1, 4, 16], strides = [1, 1, 1]} : vector<9x4x16xf32> to vector<1x4x16xf32>
    %67 = vector.shape_cast %66 : vector<1x4x16xf32> to vector<4x16xf32>
    %cst_30 = arith.constant dense<0.000000e+00> : vector<4x32xf32>
    %68 = tpu.matmul %67, %63, %cst_30 {dimension_numbers = #tpu.dot_dimension_numbers<[1], [0], [0], [1], [0, 0, 1, 1], [], []>} : vector<4x16xf32>, vector<16x32xf32>, vector<4x32xf32> -> vector<4x32xf32>
    %69 = vector.extract_strided_slice %65 {offsets = [1, 0, 0], sizes = [1, 4, 16], strides = [1, 1, 1]} : vector<9x4x16xf32> to vector<1x4x16xf32>
    %70 = vector.shape_cast %69 : vector<1x4x16xf32> to vector<4x16xf32>
    %cst_31 = arith.constant dense<0.000000e+00> : vector<4x32xf32>
    %71 = tpu.matmul %70, %63, %cst_31 {dimension_numbers = #tpu.dot_dimension_numbers<[1], [0], [0], [1], [0, 0, 1, 1], [], []>} : vector<4x16xf32>, vector<16x32xf32>, vector<4x32xf32> -> vector<4x32xf32>
    %72 = vector.extract_strided_slice %65 {offsets = [2, 0, 0], sizes = [1, 4, 16], strides = [1, 1, 1]} : vector<9x4x16xf32> to vector<1x4x16xf32>
    %73 = vector.shape_cast %72 : vector<1x4x16xf32> to vector<4x16xf32>
    %cst_32 = arith.constant dense<0.000000e+00> : vector<4x32xf32>
    %74 = tpu.matmul %73, %63, %cst_32 {dimension_numbers = #tpu.dot_dimension_numbers<[1], [0], [0], [1], [0, 0, 1, 1], [], []>} : vector<4x16xf32>, vector<16x32xf32>, vector<4x32xf32> -> vector<4x32xf32>
    %75 = vector.extract_strided_slice %65 {offsets = [3, 0, 0], sizes = [1, 4, 16], strides = [1, 1, 1]} : vector<9x4x16xf32> to vector<1x4x16xf32>
    %76 = vector.shape_cast %75 : vector<1x4x16xf32> to vector<4x16xf32>
    %cst_33 = arith.constant dense<0.000000e+00> : vector<4x32xf32>
    %77 = tpu.matmul %76, %63, %cst_33 {dimension_numbers = #tpu.dot_dimension_numbers<[1], [0], [0], [1], [0, 0, 1, 1], [], []>} : vector<4x16xf32>, vector<16x32xf32>, vector<4x32xf32> -> vector<4x32xf32>
    %78 = vector.extract_strided_slice %65 {offsets = [4, 0, 0], sizes = [1, 4, 16], strides = [1, 1, 1]} : vector<9x4x16xf32> to vector<1x4x16xf32>
    %79 = vector.shape_cast %78 : vector<1x4x16xf32> to vector<4x16xf32>
    %cst_34 = arith.constant dense<0.000000e+00> : vector<4x32xf32>
    %80 = tpu.matmul %79, %63, %cst_34 {dimension_numbers = #tpu.dot_dimension_numbers<[1], [0], [0], [1], [0, 0, 1, 1], [], []>} : vector<4x16xf32>, vector<16x32xf32>, vector<4x32xf32> -> vector<4x32xf32>
    %81 = vector.extract_strided_slice %65 {offsets = [5, 0, 0], sizes = [1, 4, 16], strides = [1, 1, 1]} : vector<9x4x16xf32> to vector<1x4x16xf32>
    %82 = vector.shape_cast %81 : vector<1x4x16xf32> to vector<4x16xf32>
    %cst_35 = arith.constant dense<0.000000e+00> : vector<4x32xf32>
    %83 = tpu.matmul %82, %63, %cst_35 {dimension_numbers = #tpu.dot_dimension_numbers<[1], [0], [0], [1], [0, 0, 1, 1], [], []>} : vector<4x16xf32>, vector<16x32xf32>, vector<4x32xf32> -> vector<4x32xf32>
    %84 = vector.extract_strided_slice %65 {offsets = [6, 0, 0], sizes = [1, 4, 16], strides = [1, 1, 1]} : vector<9x4x16xf32> to vector<1x4x16xf32>
    %85 = vector.shape_cast %84 : vector<1x4x16xf32> to vector<4x16xf32>
    %cst_36 = arith.constant dense<0.000000e+00> : vector<4x32xf32>
    %86 = tpu.matmul %85, %63, %cst_36 {dimension_numbers = #tpu.dot_dimension_numbers<[1], [0], [0], [1], [0, 0, 1, 1], [], []>} : vector<4x16xf32>, vector<16x32xf32>, vector<4x32xf32> -> vector<4x32xf32>
    %87 = vector.extract_strided_slice %65 {offsets = [7, 0, 0], sizes = [1, 4, 16], strides = [1, 1, 1]} : vector<9x4x16xf32> to vector<1x4x16xf32>
    %88 = vector.shape_cast %87 : vector<1x4x16xf32> to vector<4x16xf32>
    %cst_37 = arith.constant dense<0.000000e+00> : vector<4x32xf32>
    %89 = tpu.matmul %88, %63, %cst_37 {dimension_numbers = #tpu.dot_dimension_numbers<[1], [0], [0], [1], [0, 0, 1, 1], [], []>} : vector<4x16xf32>, vector<16x32xf32>, vector<4x32xf32> -> vector<4x32xf32>
    %90 = vector.extract_strided_slice %65 {offsets = [8, 0, 0], sizes = [1, 4, 16], strides = [1, 1, 1]} : vector<9x4x16xf32> to vector<1x4x16xf32>
    %91 = vector.shape_cast %90 : vector<1x4x16xf32> to vector<4x16xf32>
    %cst_38 = arith.constant dense<0.000000e+00> : vector<4x32xf32>
    %92 = tpu.matmul %91, %63, %cst_38 {dimension_numbers = #tpu.dot_dimension_numbers<[1], [0], [0], [1], [0, 0, 1, 1], [], []>} : vector<4x16xf32>, vector<16x32xf32>, vector<4x32xf32> -> vector<4x32xf32>
    %93 = tpu.concatenate %68, %71, %74, %77, %80, %83, %86, %89, %92 in 1 : vector<4x32xf32>, vector<4x32xf32>, vector<4x32xf32>, vector<4x32xf32>, vector<4x32xf32>, vector<4x32xf32>, vector<4x32xf32>, vector<4x32xf32>, vector<4x32xf32> -> vector<4x288xf32>
    %cst_39 = arith.constant dense<0.000000e+00> : vector<4x64xf32>
    %94 = tpu.matmul %93, %64, %cst_39 {dimension_numbers = #tpu.dot_dimension_numbers<[1], [0], [0], [1], [0, 0, 1, 1], [], []>} : vector<4x288xf32>, vector<288x64xf32>, vector<4x64xf32> -> vector<4x64xf32>
    %95 = vector.extract_strided_slice %0 {offsets = [6, 0], sizes = [1, 64], strides = [1, 1]} : vector<14x128xf32> to vector<1x64xf32>
    %96 = vector.extract_strided_slice %0 {offsets = [7, 0], sizes = [1, 64], strides = [1, 1]} : vector<14x128xf32> to vector<1x64xf32>
    %97 = vector.extract_strided_slice %0 {offsets = [8, 0], sizes = [1, 64], strides = [1, 1]} : vector<14x128xf32> to vector<1x64xf32>
    %98 = vector.broadcast %95 : vector<1x64xf32> to vector<4x64xf32>
    %99 = arith.addf %94, %98 : vector<4x64xf32>
    %cst_40 = arith.constant 0.000000e+00 : f32
    %100 = vector.broadcast %cst_40 : f32 to vector<4x64xf32>
    %101 = arith.cmpf ogt, %99, %100 : vector<4x64xf32>
    %cst_41 = arith.constant 2.000000e-01 : f32
    %102 = vector.broadcast %cst_41 : f32 to vector<4x64xf32>
    %103 = arith.mulf %102, %99 : vector<4x64xf32>
    %104 = arith.select %101, %99, %103 : vector<4x64xi1>, vector<4x64xf32>
    %105 = vector.broadcast %96 : vector<1x64xf32> to vector<4x64xf32>
    %106 = arith.mulf %104, %105 : vector<4x64xf32>
    %107 = vector.broadcast %97 : vector<1x64xf32> to vector<4x64xf32>
    %108 = arith.addf %106, %107 : vector<4x64xf32>
    %c0_42 = arith.constant 0 : index
    %c0_43 = arith.constant 0 : index
    %109 = vector.load %arg5[%c0_42, %c0_43] : memref<576x128xf32, #tpu.memory_space<vmem>>, vector<576x128xf32>
    %c0_44 = arith.constant 0 : index
    %c0_45 = arith.constant 0 : index
    %c0_46 = arith.constant 0 : index
    %110 = vector.load %arg8[%c0_44, %c0_45, %c0_46] : memref<9x1x4xf32, #tpu.memory_space<vmem>>, vector<9x1x4xf32>
    %111 = vector.extract_strided_slice %110 {offsets = [0, 0, 0], sizes = [1, 1, 4], strides = [1, 1, 1]} : vector<9x1x4xf32> to vector<1x1x4xf32>
    %112 = vector.shape_cast %111 : vector<1x1x4xf32> to vector<1x4xf32>
    %cst_47 = arith.constant dense<0.000000e+00> : vector<1x64xf32>
    %113 = tpu.matmul %112, %108, %cst_47 {dimension_numbers = #tpu.dot_dimension_numbers<[1], [0], [0], [1], [0, 0, 1, 1], [], []>} : vector<1x4xf32>, vector<4x64xf32>, vector<1x64xf32> -> vector<1x64xf32>
    %114 = vector.extract_strided_slice %110 {offsets = [1, 0, 0], sizes = [1, 1, 4], strides = [1, 1, 1]} : vector<9x1x4xf32> to vector<1x1x4xf32>
    %115 = vector.shape_cast %114 : vector<1x1x4xf32> to vector<1x4xf32>
    %cst_48 = arith.constant dense<0.000000e+00> : vector<1x64xf32>
    %116 = tpu.matmul %115, %108, %cst_48 {dimension_numbers = #tpu.dot_dimension_numbers<[1], [0], [0], [1], [0, 0, 1, 1], [], []>} : vector<1x4xf32>, vector<4x64xf32>, vector<1x64xf32> -> vector<1x64xf32>
    %117 = vector.extract_strided_slice %110 {offsets = [2, 0, 0], sizes = [1, 1, 4], strides = [1, 1, 1]} : vector<9x1x4xf32> to vector<1x1x4xf32>
    %118 = vector.shape_cast %117 : vector<1x1x4xf32> to vector<1x4xf32>
    %cst_49 = arith.constant dense<0.000000e+00> : vector<1x64xf32>
    %119 = tpu.matmul %118, %108, %cst_49 {dimension_numbers = #tpu.dot_dimension_numbers<[1], [0], [0], [1], [0, 0, 1, 1], [], []>} : vector<1x4xf32>, vector<4x64xf32>, vector<1x64xf32> -> vector<1x64xf32>
    %120 = vector.extract_strided_slice %110 {offsets = [3, 0, 0], sizes = [1, 1, 4], strides = [1, 1, 1]} : vector<9x1x4xf32> to vector<1x1x4xf32>
    %121 = vector.shape_cast %120 : vector<1x1x4xf32> to vector<1x4xf32>
    %cst_50 = arith.constant dense<0.000000e+00> : vector<1x64xf32>
    %122 = tpu.matmul %121, %108, %cst_50 {dimension_numbers = #tpu.dot_dimension_numbers<[1], [0], [0], [1], [0, 0, 1, 1], [], []>} : vector<1x4xf32>, vector<4x64xf32>, vector<1x64xf32> -> vector<1x64xf32>
    %123 = vector.extract_strided_slice %110 {offsets = [4, 0, 0], sizes = [1, 1, 4], strides = [1, 1, 1]} : vector<9x1x4xf32> to vector<1x1x4xf32>
    %124 = vector.shape_cast %123 : vector<1x1x4xf32> to vector<1x4xf32>
    %cst_51 = arith.constant dense<0.000000e+00> : vector<1x64xf32>
    %125 = tpu.matmul %124, %108, %cst_51 {dimension_numbers = #tpu.dot_dimension_numbers<[1], [0], [0], [1], [0, 0, 1, 1], [], []>} : vector<1x4xf32>, vector<4x64xf32>, vector<1x64xf32> -> vector<1x64xf32>
    %126 = vector.extract_strided_slice %110 {offsets = [5, 0, 0], sizes = [1, 1, 4], strides = [1, 1, 1]} : vector<9x1x4xf32> to vector<1x1x4xf32>
    %127 = vector.shape_cast %126 : vector<1x1x4xf32> to vector<1x4xf32>
    %cst_52 = arith.constant dense<0.000000e+00> : vector<1x64xf32>
    %128 = tpu.matmul %127, %108, %cst_52 {dimension_numbers = #tpu.dot_dimension_numbers<[1], [0], [0], [1], [0, 0, 1, 1], [], []>} : vector<1x4xf32>, vector<4x64xf32>, vector<1x64xf32> -> vector<1x64xf32>
    %129 = vector.extract_strided_slice %110 {offsets = [6, 0, 0], sizes = [1, 1, 4], strides = [1, 1, 1]} : vector<9x1x4xf32> to vector<1x1x4xf32>
    %130 = vector.shape_cast %129 : vector<1x1x4xf32> to vector<1x4xf32>
    %cst_53 = arith.constant dense<0.000000e+00> : vector<1x64xf32>
    %131 = tpu.matmul %130, %108, %cst_53 {dimension_numbers = #tpu.dot_dimension_numbers<[1], [0], [0], [1], [0, 0, 1, 1], [], []>} : vector<1x4xf32>, vector<4x64xf32>, vector<1x64xf32> -> vector<1x64xf32>
    %132 = vector.extract_strided_slice %110 {offsets = [7, 0, 0], sizes = [1, 1, 4], strides = [1, 1, 1]} : vector<9x1x4xf32> to vector<1x1x4xf32>
    %133 = vector.shape_cast %132 : vector<1x1x4xf32> to vector<1x4xf32>
    %cst_54 = arith.constant dense<0.000000e+00> : vector<1x64xf32>
    %134 = tpu.matmul %133, %108, %cst_54 {dimension_numbers = #tpu.dot_dimension_numbers<[1], [0], [0], [1], [0, 0, 1, 1], [], []>} : vector<1x4xf32>, vector<4x64xf32>, vector<1x64xf32> -> vector<1x64xf32>
    %135 = vector.extract_strided_slice %110 {offsets = [8, 0, 0], sizes = [1, 1, 4], strides = [1, 1, 1]} : vector<9x1x4xf32> to vector<1x1x4xf32>
    %136 = vector.shape_cast %135 : vector<1x1x4xf32> to vector<1x4xf32>
    %cst_55 = arith.constant dense<0.000000e+00> : vector<1x64xf32>
    %137 = tpu.matmul %136, %108, %cst_55 {dimension_numbers = #tpu.dot_dimension_numbers<[1], [0], [0], [1], [0, 0, 1, 1], [], []>} : vector<1x4xf32>, vector<4x64xf32>, vector<1x64xf32> -> vector<1x64xf32>
    %138 = tpu.concatenate %113, %116, %119, %122, %125, %128, %131, %134, %137 in 1 : vector<1x64xf32>, vector<1x64xf32>, vector<1x64xf32>, vector<1x64xf32>, vector<1x64xf32>, vector<1x64xf32>, vector<1x64xf32>, vector<1x64xf32>, vector<1x64xf32> -> vector<1x576xf32>
    %cst_56 = arith.constant dense<0.000000e+00> : vector<1x128xf32>
    %139 = tpu.matmul %138, %109, %cst_56 {dimension_numbers = #tpu.dot_dimension_numbers<[1], [0], [0], [1], [0, 0, 1, 1], [], []>} : vector<1x576xf32>, vector<576x128xf32>, vector<1x128xf32> -> vector<1x128xf32>
    %140 = vector.extract_strided_slice %0 {offsets = [9, 0], sizes = [1, 128], strides = [1, 1]} : vector<14x128xf32> to vector<1x128xf32>
    %141 = vector.extract_strided_slice %0 {offsets = [10, 0], sizes = [1, 128], strides = [1, 1]} : vector<14x128xf32> to vector<1x128xf32>
    %142 = vector.extract_strided_slice %0 {offsets = [11, 0], sizes = [1, 128], strides = [1, 1]} : vector<14x128xf32> to vector<1x128xf32>
    %143 = arith.addf %139, %140 : vector<1x128xf32>
    %cst_57 = arith.constant 0.000000e+00 : f32
    %144 = vector.broadcast %cst_57 : f32 to vector<1x128xf32>
    %145 = arith.cmpf ogt, %143, %144 : vector<1x128xf32>
    %cst_58 = arith.constant 2.000000e-01 : f32
    %146 = vector.broadcast %cst_58 : f32 to vector<1x128xf32>
    %147 = arith.mulf %146, %143 : vector<1x128xf32>
    %148 = arith.select %145, %143, %147 : vector<1x128xi1>, vector<1x128xf32>
    %149 = arith.mulf %148, %141 : vector<1x128xf32>
    %150 = arith.addf %149, %142 : vector<1x128xf32>
    %151 = vector.extract_strided_slice %0 {offsets = [12, 0], sizes = [1, 128], strides = [1, 1]} : vector<14x128xf32> to vector<1x128xf32>
    %152 = vector.extract_strided_slice %0 {offsets = [13, 0], sizes = [1, 1], strides = [1, 1]} : vector<14x128xf32> to vector<1x1xf32>
    %153 = arith.mulf %150, %151 : vector<1x128xf32>
    %cst_59 = arith.constant dense<0.000000e+00> : vector<1xf32>
    %154 = vector.multi_reduction <add>, %153, %cst_59 [1] : vector<1x128xf32> to vector<1xf32>
    %155 = vector.shape_cast %154 : vector<1xf32> to vector<1x1xf32>
    %156 = arith.addf %155, %152 : vector<1x1xf32>
    %157 = math.absf %156 : vector<1x1xf32>
    %cst_60 = arith.constant 0.000000e+00 : f32
    %158 = vector.broadcast %cst_60 : f32 to vector<1x1xf32>
    %159 = arith.subf %158, %157 : vector<1x1xf32>
    %160 = math.exp %159 : vector<1x1xf32>
    %cst_61 = arith.constant 0.000000e+00 : f32
    %161 = vector.broadcast %cst_61 : f32 to vector<1x1xf32>
    %162 = arith.cmpf oge, %156, %161 : vector<1x1xf32>
    %cst_62 = arith.constant 1.000000e+00 : f32
    %163 = vector.broadcast %cst_62 : f32 to vector<1x1xf32>
    %164 = arith.addf %163, %160 : vector<1x1xf32>
    %cst_63 = arith.constant 1.000000e+00 : f32
    %165 = vector.broadcast %cst_63 : f32 to vector<1x1xf32>
    %166 = arith.divf %165, %164 : vector<1x1xf32>
    %cst_64 = arith.constant 1.000000e+00 : f32
    %167 = vector.broadcast %cst_64 : f32 to vector<1x1xf32>
    %168 = arith.addf %167, %160 : vector<1x1xf32>
    %169 = arith.divf %160, %168 : vector<1x1xf32>
    %170 = arith.select %162, %166, %169 : vector<1x1xi1>, vector<1x1xf32>
    %c0_65 = arith.constant 0 : index
    %c0_66 = arith.constant 0 : index
    %c0_67 = arith.constant 0 : index
    %171 = vector.load %arg10[%c0_65, %c0_66, %c0_67] : memref<1x1x1xf32, #tpu.memory_space<vmem>>, vector<1x1x1xf32>
    %172 = vector.shape_cast %171 : vector<1x1x1xf32> to vector<1x1xf32>
    %173 = vector.shape_cast %170 : vector<1x1xf32> to vector<1x1x1xf32>
    tpu.vector_store %arg10[%c0_65, %c0_66, %c0_67], %173 {strides = array<i32>} : memref<1x1x1xf32, #tpu.memory_space<vmem>>, vector<1x1x1xf32>,
    return
  }
  func.func @transform_0(%arg0: i32) -> (i32, i32, i32) {
    %c0_i32 = arith.constant 0 : i32
    %c0_i32_0 = arith.constant 0 : i32
    %c0_i32_1 = arith.constant 0 : i32
    return %arg0, %c0_i32, %c0_i32_0 : i32, i32, i32
  }
  func.func @transform_1(%arg0: i32) -> (i32, i32) {
    %c0_i32 = arith.constant 0 : i32
    %c0_i32_0 = arith.constant 0 : i32
    %c0_i32_1 = arith.constant 0 : i32
    return %c0_i32, %c0_i32_0 : i32, i32
  }
  func.func @transform_2(%arg0: i32) -> (i32, i32) {
    %c0_i32 = arith.constant 0 : i32
    %c0_i32_0 = arith.constant 0 : i32
    %c0_i32_1 = arith.constant 0 : i32
    return %c0_i32, %c0_i32_0 : i32, i32
  }
  func.func @transform_3(%arg0: i32) -> (i32, i32) {
    %c0_i32 = arith.constant 0 : i32
    %c0_i32_0 = arith.constant 0 : i32
    %c0_i32_1 = arith.constant 0 : i32
    return %c0_i32, %c0_i32_0 : i32, i32
  }
  func.func @transform_4(%arg0: i32) -> (i32, i32) {
    %c0_i32 = arith.constant 0 : i32
    %c0_i32_0 = arith.constant 0 : i32
    %c0_i32_1 = arith.constant 0 : i32
    return %c0_i32, %c0_i32_0 : i32, i32
  }
  func.func @transform_5(%arg0: i32) -> (i32, i32, i32) {
    %c0_i32 = arith.constant 0 : i32
    %c0_i32_0 = arith.constant 0 : i32
    %c0_i32_1 = arith.constant 0 : i32
    %c0_i32_2 = arith.constant 0 : i32
    return %c0_i32, %c0_i32_0, %c0_i32_1 : i32, i32, i32
  }
  func.func @transform_6(%arg0: i32) -> (i32, i32, i32) {
    %c0_i32 = arith.constant 0 : i32
    %c0_i32_0 = arith.constant 0 : i32
    %c0_i32_1 = arith.constant 0 : i32
    %c0_i32_2 = arith.constant 0 : i32
    return %c0_i32, %c0_i32_0, %c0_i32_1 : i32, i32, i32
  }
  func.func @transform_7(%arg0: i32) -> (i32, i32, i32) {
    %c0_i32 = arith.constant 0 : i32
    %c0_i32_0 = arith.constant 0 : i32
    %c0_i32_1 = arith.constant 0 : i32
    %c0_i32_2 = arith.constant 0 : i32
    return %c0_i32, %c0_i32_0, %c0_i32_1 : i32, i32, i32
  }
  func.func @transform_8(%arg0: i32) -> (i32, i32) {
    %c0_i32 = arith.constant 0 : i32
    %c0_i32_0 = arith.constant 0 : i32
    %c0_i32_1 = arith.constant 0 : i32
    return %c0_i32, %c0_i32_0 : i32, i32
  }
  func.func @transform_9(%arg0: i32) -> (i32, i32, i32) {
    %c0_i32 = arith.constant 0 : i32
    %c0_i32_0 = arith.constant 0 : i32
    %c0_i32_1 = arith.constant 0 : i32
    return %arg0, %c0_i32, %c0_i32_0 : i32, i32, i32
  }
}

</mosaic_0001>

<llo_original>
// kernel: discriminator_forward.1
$region0: #{discriminator_forward.1}
  #allocation0 [shape = 'u32[]', space=smem, size = 0x4, offset = 0x4, fixed_abs, tag = 'smem constant byte address 0x4 - core index']
  #allocation1 [shape = 'u32[72,128]{1,0:T(1,128)}', space=vmem, size = 0x9000, scoped, tag = 'internal scratch']
  %s0 = inlined_call_operand.vmem [shape: f32[2,64,36], index: 0, kind: input, shape index: {}]
  %s1 = inlined_call_operand.vmem [shape: f32[36,16], index: 1, kind: input, shape index: {}]
  %s2 = inlined_call_operand.vmem [shape: f32[144,32], index: 2, kind: input, shape index: {}]
  %s3 = inlined_call_operand.vmem [shape: f32[288,64], index: 3, kind: input, shape index: {}]
  %s4 = inlined_call_operand.vmem [shape: f32[576,128], index: 4, kind: input, shape index: {}]
  %s5 = inlined_call_operand.vmem [shape: f32[9,16,64], index: 5, kind: input, shape index: {}]
  %s6 = inlined_call_operand.vmem [shape: f32[9,4,16], index: 6, kind: input, shape index: {}]
  %s7 = inlined_call_operand.vmem [shape: f32[9,1,4], index: 7, kind: input, shape index: {}]
  %s8 = inlined_call_operand.vmem [shape: f32[14,128], index: 8, kind: input, shape index: {}]
  %s9 = inlined_call_operand.vmem [shape: f32[2,1,1], index: 9, kind: output, shape index: {}]
  %s10 = sld [smem:[#allocation0]]
  $region69: #{discriminator_forward.1} parent=0
    _
  %s12 = ssub.s32 1, %s10
  %s13 = scalar_select 0, %s12, %s10
  loop: start=0, step=1, limit=4
  $region2: #{discriminator_forward.1} parent=0 // loop_pre_header
    _
  $region3: #{discriminator_forward.1} parent=0 // loop_header
    %s15 = sphi 0, %s19
    %p16 = scmp.ge.s32.totalorder %s15, 4
    %s25 = sphi 0, %s27
    %s28 = sphi 0, %s25
    %s29 = sphi 0, %s28
    %s45 = sphi 0, %s29
    %s49 = sphi 0, %s49
    %s51 = sphi 0, %s49
    %s52 = sphi 0, %s51
    %s66 = sphi 0, %s52
    %s70 = sphi 0, %s70
    %s72 = sphi 0, %s70
    %s73 = sphi 0, %s72
    %s87 = sphi 0, %s73
    %s91 = sphi 0, %s91
    %s93 = sphi 0, %s91
    %s94 = sphi 0, %s93
    %s108 = sphi 0, %s94
    %s112 = sphi 0, %s112
    %s114 = sphi 0, %s112
    %s115 = sphi 0, %s114
    %s129 = sphi 0, %s115
    %s133 = sphi 0, %s133
    %s135 = sphi 0, %s133
    %s136 = sphi 0, %s135
    %s150 = sphi 0, %s136
    %s154 = sphi 0, %s154
    %s156 = sphi 0, %s154
    %s157 = sphi 0, %s156
    %s171 = sphi 0, %s157
    %s175 = sphi 0, %s175
    %s177 = sphi 0, %s175
    %s178 = sphi 0, %s177
    %s192 = sphi 0, %s178
    %s196 = sphi 0, %s196
    %s198 = sphi 0, %s196
    %s199 = sphi 0, %s198
    %s213 = sphi 0, %s199
    %s219 = sphi 0, %s221
    %s222 = sphi 0, %s219
    %s223 = sphi 0, %s222
    %s239 = sphi 0, %s223
  $region4: #{discriminator_forward.1} parent=0 // loop_header_branch
    %18 = sbr.rel (%p16) target = $region8
  $region5: #{discriminator_forward.1} parent=0 // loop_body
    %s20 = ssub.s32 %s15, 1
    %s21 = ssub.s32 %s15, 2
    %s22 = sadd.s32 %s15, 1
    %s23 = ssub.s32 %s15, %s22
    %p24 = scmp.eq.s32.totalorder %s23, 0
    %s26 = sadd.s32 %s25, 1
    %s27 = scalar_select %p24, %s25, %s26
    %p30 = pneg %p24
    %p31 = scmp.eq.s32.totalorder %s15, 1
    %p32 = por %p30, %p31
    %p33 = scmp.ne.s32.totalorder %s25, %s28
    %p34 = scmp.eq.s32.totalorder %s15, 0
    %p35 = por %p33, %p34
    %p36 = scmp.ne.s32.totalorder %s25, %s28
    %p37 = scmp.eq.s32.totalorder %s20, 1
    %p38 = por %p36, %p37
    %p39 = scmp.ne.s32.totalorder %s28, %s29
    %p40 = scmp.eq.s32.totalorder %s20, 0
    %p41 = por %p39, %p40
    %p42 = scmp.ne.s32.totalorder %s28, %s29
    %p43 = scmp.eq.s32.totalorder %s21, 1
    %p44 = por %p42, %p43
    %p46 = scmp.ne.s32.totalorder %s29, %s45
    %p47 = scmp.eq.s32.totalorder %s21, 0
    %p48 = por %p46, %p47
    %s50 = sadd.s32 %s49, 1
    %p53 = scmp.eq.s32.totalorder %s15, 1
    %p54 = scmp.ne.s32.totalorder %s49, %s51
    %p55 = scmp.eq.s32.totalorder %s15, 0
    %p56 = por %p54, %p55
    %p57 = scmp.ne.s32.totalorder %s49, %s51
    %p58 = scmp.eq.s32.totalorder %s20, 1
    %p59 = por %p57, %p58
    %p60 = scmp.ne.s32.totalorder %s51, %s52
    %p61 = scmp.eq.s32.totalorder %s20, 0
    %p62 = por %p60, %p61
    %p63 = scmp.ne.s32.totalorder %s51, %s52
    %p64 = scmp.eq.s32.totalorder %s21, 1
    %p65 = por %p63, %p64
    %p67 = scmp.ne.s32.totalorder %s52, %s66
    %p68 = scmp.eq.s32.totalorder %s21, 0
    %p69 = por %p67, %p68
    %s71 = sadd.s32 %s70, 1
    %p74 = scmp.eq.s32.totalorder %s15, 1
    %p75 = scmp.ne.s32.totalorder %s70, %s72
    %p76 = scmp.eq.s32.totalorder %s15, 0
    %p77 = por %p75, %p76
    %p78 = scmp.ne.s32.totalorder %s70, %s72
    %p79 = scmp.eq.s32.totalorder %s20, 1
    %p80 = por %p78, %p79
    %p81 = scmp.ne.s32.totalorder %s72, %s73
    %p82 = scmp.eq.s32.totalorder %s20, 0
    %p83 = por %p81, %p82
    %p84 = scmp.ne.s32.totalorder %s72, %s73
    %p85 = scmp.eq.s32.totalorder %s21, 1
    %p86 = por %p84, %p85
    %p88 = scmp.ne.s32.totalorder %s73, %s87
    %p89 = scmp.eq.s32.totalorder %s21, 0
    %p90 = por %p88, %p89
    %s92 = sadd.s32 %s91, 1
    %p95 = scmp.eq.s32.totalorder %s15, 1
    %p96 = scmp.ne.s32.totalorder %s91, %s93
    %p97 = scmp.eq.s32.totalorder %s15, 0
    %p98 = por %p96, %p97
    %p99 = scmp.ne.s32.totalorder %s91, %s93
    %p100 = scmp.eq.s32.totalorder %s20, 1
    %p101 = por %p99, %p100
    %p102 = scmp.ne.s32.totalorder %s93, %s94
    %p103 = scmp.eq.s32.totalorder %s20, 0
    %p104 = por %p102, %p103
    %p105 = scmp.ne.s32.totalorder %s93, %s94
    %p106 = scmp.eq.s32.totalorder %s21, 1
    %p107 = por %p105, %p106
    %p109 = scmp.ne.s32.totalorder %s94, %s108
    %p110 = scmp.eq.s32.totalorder %s21, 0
    %p111 = por %p109, %p110
    %s113 = sadd.s32 %s112, 1
    %p116 = scmp.eq.s32.totalorder %s15, 1
    %p117 = scmp.ne.s32.totalorder %s112, %s114
    %p118 = scmp.eq.s32.totalorder %s15, 0
    %p119 = por %p117, %p118
    %p120 = scmp.ne.s32.totalorder %s112, %s114
    %p121 = scmp.eq.s32.totalorder %s20, 1
    %p122 = por %p120, %p121
    %p123 = scmp.ne.s32.totalorder %s114, %s115
    %p124 = scmp.eq.s32.totalorder %s20, 0
    %p125 = por %p123, %p124
    %p126 = scmp.ne.s32.totalorder %s114, %s115
    %p127 = scmp.eq.s32.totalorder %s21, 1
    %p128 = por %p126, %p127
    %p130 = scmp.ne.s32.totalorder %s115, %s129
    %p131 = scmp.eq.s32.totalorder %s21, 0
    %p132 = por %p130, %p131
    %s134 = sadd.s32 %s133, 1
    %p137 = scmp.eq.s32.totalorder %s15, 1
    %p138 = scmp.ne.s32.totalorder %s133, %s135
    %p139 = scmp.eq.s32.totalorder %s15, 0
    %p140 = por %p138, %p139
    %p141 = scmp.ne.s32.totalorder %s133, %s135
    %p142 = scmp.eq.s32.totalorder %s20, 1
    %p143 = por %p141, %p142
    %p144 = scmp.ne.s32.totalorder %s135, %s136
    %p145 = scmp.eq.s32.totalorder %s20, 0
    %p146 = por %p144, %p145
    %p147 = scmp.ne.s32.totalorder %s135, %s136
    %p148 = scmp.eq.s32.totalorder %s21, 1
    %p149 = por %p147, %p148
    %p151 = scmp.ne.s32.totalorder %s136, %s150
    %p152 = scmp.eq.s32.totalorder %s21, 0
    %p153 = por %p151, %p152
    %s155 = sadd.s32 %s154, 1
    %p158 = scmp.eq.s32.totalorder %s15, 1
    %p159 = scmp.ne.s32.totalorder %s154, %s156
    %p160 = scmp.eq.s32.totalorder %s15, 0
    %p161 = por %p159, %p160
    %p162 = scmp.ne.s32.totalorder %s154, %s156
    %p163 = scmp.eq.s32.totalorder %s20, 1
    %p164 = por %p162, %p163
    %p165 = scmp.ne.s32.totalorder %s156, %s157
    %p166 = scmp.eq.s32.totalorder %s20, 0
    %p167 = por %p165, %p166
    %p168 = scmp.ne.s32.totalorder %s156, %s157
    %p169 = scmp.eq.s32.totalorder %s21, 1
    %p170 = por %p168, %p169
    %p172 = scmp.ne.s32.totalorder %s157, %s171
    %p173 = scmp.eq.s32.totalorder %s21, 0
    %p174 = por %p172, %p173
    %s176 = sadd.s32 %s175, 1
    %p179 = scmp.eq.s32.totalorder %s15, 1
    %p180 = scmp.ne.s32.totalorder %s175, %s177
    %p181 = scmp.eq.s32.totalorder %s15, 0
    %p182 = por %p180, %p181
    %p183 = scmp.ne.s32.totalorder %s175, %s177
    %p184 = scmp.eq.s32.totalorder %s20, 1
    %p185 = por %p183, %p184
    %p186 = scmp.ne.s32.totalorder %s177, %s178
    %p187 = scmp.eq.s32.totalorder %s20, 0
    %p188 = por %p186, %p187
    %p189 = scmp.ne.s32.totalorder %s177, %s178
    %p190 = scmp.eq.s32.totalorder %s21, 1
    %p191 = por %p189, %p190
    %p193 = scmp.ne.s32.totalorder %s178, %s192
    %p194 = scmp.eq.s32.totalorder %s21, 0
    %p195 = por %p193, %p194
    %s197 = sadd.s32 %s196, 1
    %p200 = scmp.eq.s32.totalorder %s15, 1
    %p201 = scmp.ne.s32.totalorder %s196, %s198
    %p202 = scmp.eq.s32.totalorder %s15, 0
    %p203 = por %p201, %p202
    %p204 = scmp.ne.s32.totalorder %s196, %s198
    %p205 = scmp.eq.s32.totalorder %s20, 1
    %p206 = por %p204, %p205
    %p207 = scmp.ne.s32.totalorder %s198, %s199
    %p208 = scmp.eq.s32.totalorder %s20, 0
    %p209 = por %p207, %p208
    %p210 = scmp.ne.s32.totalorder %s198, %s199
    %p211 = scmp.eq.s32.totalorder %s21, 1
    %p212 = por %p210, %p211
    %p214 = scmp.ne.s32.totalorder %s199, %s213
    %p215 = scmp.eq.s32.totalorder %s21, 0
    %p216 = por %p214, %p215
    %s217 = ssub.s32 %s15, %s22
    %p218 = scmp.eq.s32.totalorder %s217, 0
    %s220 = sadd.s32 %s219, 1
    %s221 = scalar_select %p218, %s219, %s220
    %p224 = pneg %p218
    %p225 = scmp.eq.s32.totalorder %s15, 1
    %p226 = por %p224, %p225
    %p227 = scmp.ne.s32.totalorder %s219, %s222
    %p228 = scmp.eq.s32.totalorder %s15, 0
    %p229 = por %p227, %p228
    %p230 = scmp.ne.s32.totalorder %s219, %s222
    %p231 = scmp.eq.s32.totalorder %s20, 1
    %p232 = por %p230, %p231
    %p233 = scmp.ne.s32.totalorder %s222, %s223
    %p234 = scmp.eq.s32.totalorder %s20, 0
    %p235 = por %p233, %p234
    %p236 = scmp.ne.s32.totalorder %s222, %s223
    %p237 = scmp.eq.s32.totalorder %s21, 1
    %p238 = por %p236, %p237
    %p240 = scmp.ne.s32.totalorder %s223, %s239
    %p241 = scmp.eq.s32.totalorder %s21, 0
    %p242 = por %p240, %p241
    %p243 = scmp.le.s32.totalorder 1, %s15
    %p244 = scmp.lt.s32.totalorder %s15, 3
    %p245 = pnand %p243, %p244
    %p246 = pneg %p245
    // Predicated region
    $region9: #{discriminator_forward.1} parent=5 // pred_check
      _
    $region10: #{discriminator_forward.1} parent=5 // pred_check_branch
      %248 = sbr.rel (%p245) target = $region12
    $region11: #{discriminator_forward.1} parent=5 // pred_region
      %s249 = ssub.s32 %s15, 1
      // Predicated region
      $region13: #{discriminator_forward.1} parent=11 // pred_check
        %p250 = pneg %p62
      $region14: #{discriminator_forward.1} parent=11 // pred_check_branch
        %252 = sbr.rel (%p250) target = $region16
      $region15: #{discriminator_forward.1} parent=11 // pred_region
        _
      $region16: #{discriminator_forward.1} parent=11 // pred_fallthru
        _
      // Predicated region
      $region17: #{discriminator_forward.1} parent=11 // pred_check
        %p253 = pneg %p83
      $region18: #{discriminator_forward.1} parent=11 // pred_check_branch
        %255 = sbr.rel (%p253) target = $region20
      $region19: #{discriminator_forward.1} parent=11 // pred_region
        _
      $region20: #{discriminator_forward.1} parent=11 // pred_fallthru
        _
      // Predicated region
      $region21: #{discriminator_forward.1} parent=11 // pred_check
        %p256 = pneg %p104
      $region22: #{discriminator_forward.1} parent=11 // pred_check_branch
        %258 = sbr.rel (%p256) target = $region24
      $region23: #{discriminator_forward.1} parent=11 // pred_region
        _
      $region24: #{discriminator_forward.1} parent=11 // pred_fallthru
        _
      // Predicated region
      $region25: #{discriminator_forward.1} parent=11 // pred_check
        %p259 = pneg %p125
      $region26: #{discriminator_forward.1} parent=11 // pred_check_branch
        %261 = sbr.rel (%p259) target = $region28
      $region27: #{discriminator_forward.1} parent=11 // pred_region
        _
      $region28: #{discriminator_forward.1} parent=11 // pred_fallthru
        _
      // Predicated region
      $region29: #{discriminator_forward.1} parent=11 // pred_check
        %p262 = pneg %p146
      $region30: #{discriminator_forward.1} parent=11 // pred_check_branch
        %264 = sbr.rel (%p262) target = $region32
      $region31: #{discriminator_forward.1} parent=11 // pred_region
        _
      $region32: #{discriminator_forward.1} parent=11 // pred_fallthru
        _
      // Predicated region
      $region33: #{discriminator_forward.1} parent=11 // pred_check
        %p265 = pneg %p167
      $region34: #{discriminator_forward.1} parent=11 // pred_check_branch
        %267 = sbr.rel (%p265) target = $region36
      $region35: #{discriminator_forward.1} parent=11 // pred_region
        _
      $region36: #{discriminator_forward.1} parent=11 // pred_fallthru
        _
      // Predicated region
      $region37: #{discriminator_forward.1} parent=11 // pred_check
        %p268 = pneg %p188
      $region38: #{discriminator_forward.1} parent=11 // pred_check_branch
        %270 = sbr.rel (%p268) target = $region40
      $region39: #{discriminator_forward.1} parent=11 // pred_region
        _
      $region40: #{discriminator_forward.1} parent=11 // pred_fallthru
        _
      // Predicated region
      $region41: #{discriminator_forward.1} parent=11 // pred_check
        %p271 = pneg %p209
      $region42: #{discriminator_forward.1} parent=11 // pred_check_branch
        %273 = sbr.rel (%p271) target = $region44
      $region43: #{discriminator_forward.1} parent=11 // pred_region
        _
      $region44: #{discriminator_forward.1} parent=11 // pred_fallthru
        _
    $region12: #{discriminator_forward.1} parent=5 // pred_fallthru
      _
    %p274 = scmp.lt.s32.totalorder %s15, 2
    // Predicated region
    $region45: #{discriminator_forward.1} parent=5 // pred_check
      %p275 = pneg %p274
    $region46: #{discriminator_forward.1} parent=5 // pred_check_branch
      %277 = sbr.rel (%p275) target = $region48
    $region47: #{discriminator_forward.1} parent=5 // pred_region
      // Predicated region
      $region49: #{discriminator_forward.1} parent=47 // pred_check
        %p278 = pneg %p35
      $region50: #{discriminator_forward.1} parent=47 // pred_check_branch
        %280 = sbr.rel (%p278) target = $region52
      $region51: #{discriminator_forward.1} parent=47 // pred_region
        %p281 = scmp.lt.s32.totalorder %s15, 1
        %s282 = scalar_select %p281, %s15, 1
        %s283 = smul.addr %s282, 8
        %s284 = smul.addr %s283, 8
        %s285 = scalar_lea.vmem %s0, %s284
      $region52: #{discriminator_forward.1} parent=47 // pred_fallthru
        _
    $region48: #{discriminator_forward.1} parent=5 // pred_fallthru
      _
    %p286 = scmp.le.s32.totalorder 1, %s15
    %p287 = scmp.lt.s32.totalorder %s15, 3
    %p288 = pnand %p286, %p287
    %p289 = pneg %p288
    // Predicated region
    $region53: #{discriminator_forward.1} parent=5 // pred_check
      _
    $region54: #{discriminator_forward.1} parent=5 // pred_check_branch
      %291 = sbr.rel (%p288) target = $region56
    $region55: #{discriminator_forward.1} parent=5 // pred_region
      %s292 = ssub.s32 %s15, 1
      %p293 = scmp.lt.s32.totalorder %s20, 1
      %s294 = scalar_select %p293, %s20, 1
      %s295 = smul.addr %s294, 8
      %s296 = smul.addr %s295, 8
      %s297 = scalar_lea.vmem %s0, %s296
      %p298 = pneg %p41
      %p299 = pneg %p38
      %p300 = pneg %p62
      %p301 = pneg %p59
      %p302 = pneg %p83
      %p303 = pneg %p80
      %p304 = pneg %p104
      %p305 = pneg %p101
      %p306 = pneg %p125
      %p307 = pneg %p122
      %p308 = pneg %p146
      %p309 = pneg %p143
      %p310 = pneg %p167
      %p311 = pneg %p164
      %p312 = pneg %p188
      %p313 = pneg %p185
      %p314 = pneg %p209
      %p315 = pneg %p206
      %p316 = pneg %p235
      %p317 = pneg %p232
      %p318 = scmp.lt.s32.totalorder %s20, 1
      %s319 = scalar_select %p318, %s20, 1
      %s320 = scalar_lea.vmem %s9, %s319
      %p321 = scmp.lt.s32.totalorder %s20, 1
      %s322 = scalar_select %p321, %s20, 1
      %s323 = smul.addr %s322, 8
      %s324 = smul.addr %s323, 8
      %s325 = scalar_lea.vmem %s0, %s324
      %p326 = scmp.lt.s32.totalorder %s20, 1
      %s327 = scalar_select %p326, %s20, 1
      %s328 = scalar_lea.vmem %s9, %s327
      %v329 = vld [vmem:[%s8] sm:$0xff]
      %v330 = vld [vmem:[%s8 + $0x8] sm:$0x3f]
      %v331 = vld [vmem:[%s325] sm:$0xff]
      %v332 = vld [vmem:[%s325 + $0x8] sm:$0xff]
      %v333 = vld [vmem:[%s325 + $0x10] sm:$0xff]
      %v334 = vld [vmem:[%s325 + $0x18] sm:$0xff]
      %v335 = vld [vmem:[%s325 + $0x20] sm:$0xff]
      %v336 = vld [vmem:[%s325 + $0x28] sm:$0xff]
      %v337 = vld [vmem:[%s325 + $0x30] sm:$0xff]
      %v338 = vld [vmem:[%s325 + $0x38] sm:$0xff]
      %v339 = vld [vmem:[%s1] sm:$0xff]
      %v340 = vld [vmem:[%s1 + $0x8] sm:$0xff]
      %v341 = vld [vmem:[%s1 + $0x10] sm:$0xff]
      %v342 = vld [vmem:[%s1 + $0x18] sm:$0xff]
      %v343 = vld [vmem:[%s1 + $0x20] sm:$0xf]
      %v344 = vperm.slane %v329, 0
      %vm345 = vcmask 293888
      %v347 = vsel %vm345, %v331, 0
      %v350 = vsel %vm345, %v332, 0
      %v353 = vsel %vm345, %v333, 0
      %v356 = vsel %vm345, %v334, 0
      %v359 = vsel %vm345, %v335, 0
      %v362 = vsel %vm345, %v336, 0
      %v365 = vsel %vm345, %v337, 0
      %v368 = vsel %vm345, %v338, 0
      %vm370 = vcmask 1043456
      %v372 = vsel %vm370, %v343, 0
      %374 = vmatpush.msra.mxu0 0.0
      %375 = vmatpush.msra.mxu0 0.0
      %376 = vmatpush.msra.mxu0 0.0
      %377 = vmatpush.msra.mxu0 0.0
      %378 = vmatpush.msra.mxu0 0.0
      %379 = vmatpush.msra.mxu0 0.0
      %380 = vmatpush.msra.mxu0 0.0
      %381 = vmatpush.msra.mxu0 0.0
      %382 = vmatpush.msra.mxu0 0.0
      %383 = vmatpush.msra.mxu0 0.0
      %384 = vmatpush.msra.mxu0 0.0
      %385 = vmatpush.msra.mxu0 %v372
      %386 = vmatpush.msra.mxu0 %v342
      %387 = vmatpush.msra.mxu0 %v341
      %388 = vmatpush.msra.mxu0 %v340
      %389 = vmatpush.msra.mxu0 %v339
      %390 = vmatmul.f32.gmra.mxu0 %v347
      %v391 = vpop.f32.mrf.mxu0
      %v392 = vadd.f32 %v344, %v391
      %393 = vmatmul.f32.gmra.mxu0 %v350
      %v394 = vpop.f32.mrf.mxu0
      %v395 = vadd.f32 %v344, %v394
      %396 = vmatmul.f32.gmra.mxu0 %v353
      %v397 = vpop.f32.mrf.mxu0
      %v398 = vadd.f32 %v344, %v397
      %399 = vmatmul.f32.gmra.mxu0 %v356
      %v400 = vpop.f32.mrf.mxu0
      %v401 = vadd.f32 %v344, %v400
      %402 = vmatmul.f32.gmra.mxu0 %v359
      %v403 = vpop.f32.mrf.mxu0
      %v404 = vadd.f32 %v344, %v403
      %405 = vmatmul.f32.gmra.mxu0 %v362
      %v406 = vpop.f32.mrf.mxu0
      %v407 = vadd.f32 %v344, %v406
      %408 = vmatmul.f32.gmra.mxu0 %v365
      %v409 = vpop.f32.mrf.mxu0
      %v410 = vadd.f32 %v344, %v409
      %411 = vmatmul.f32.gmra.mxu0 %v368
      %v412 = vpop.f32.mrf.mxu0
      %v413 = vadd.f32 %v344, %v412
      %414 = vdwg.mxu0
      %vm415 = vcmp.gt.f32.partialorder %v392, 0.0
      %vm416 = vcmp.gt.f32.partialorder %v395, 0.0
      %vm417 = vcmp.gt.f32.partialorder %v398, 0.0
      %vm418 = vcmp.gt.f32.partialorder %v401, 0.0
      %vm419 = vcmp.gt.f32.partialorder %v404, 0.0
      %vm420 = vcmp.gt.f32.partialorder %v407, 0.0
      %vm421 = vcmp.gt.f32.partialorder %v410, 0.0
      %vm422 = vcmp.gt.f32.partialorder %v413, 0.0
      %v423 = vmul.f32 %v392, 0.2
      %v424 = vmul.f32 %v395, 0.2
      %v425 = vmul.f32 %v398, 0.2
      %v426 = vmul.f32 %v401, 0.2
      %v427 = vmul.f32 %v404, 0.2
      %v428 = vmul.f32 %v407, 0.2
      %v429 = vmul.f32 %v410, 0.2
      %v430 = vmul.f32 %v413, 0.2
      %v431 = vsel %vm415, %v392, %v423
      %v432 = vsel %vm416, %v395, %v424
      %v433 = vsel %vm417, %v398, %v425
      %v434 = vsel %vm418, %v401, %v426
      %v435 = vsel %vm419, %v404, %v427
      %v436 = vsel %vm420, %v407, %v428
      %v437 = vsel %vm421, %v410, %v429
      %v438 = vsel %vm422, %v413, %v430
      %v439 = vperm.slane %v329, 1
      %v440 = vmul.f32 %v431, %v439
      %v441 = vmul.f32 %v432, %v439
      %v442 = vmul.f32 %v433, %v439
      %v443 = vmul.f32 %v434, %v439
      %v444 = vmul.f32 %v435, %v439
      %v445 = vmul.f32 %v436, %v439
      %v446 = vmul.f32 %v437, %v439
      %v447 = vmul.f32 %v438, %v439
      %v448 = vperm.slane %v329, 2
      %v449 = vadd.f32 %v440, %v448
      %v450 = vadd.f32 %v441, %v448
      %v451 = vadd.f32 %v442, %v448
      %v452 = vadd.f32 %v443, %v448
      %v453 = vadd.f32 %v444, %v448
      %v454 = vadd.f32 %v445, %v448
      %v455 = vadd.f32 %v446, %v448
      %v456 = vadd.f32 %v447, %v448
      %v457 = vld [vmem:[%s2] sm:$0xff]
      %v458 = vld [vmem:[%s2 + $0x8] sm:$0xff]
      %v459 = vld [vmem:[%s2 + $0x10] sm:$0xff]
      %v460 = vld [vmem:[%s2 + $0x18] sm:$0xff]
      %v461 = vld [vmem:[%s2 + $0x20] sm:$0xff]
      %v462 = vld [vmem:[%s2 + $0x28] sm:$0xff]
      %v463 = vld [vmem:[%s2 + $0x30] sm:$0xff]
      %v464 = vld [vmem:[%s2 + $0x38] sm:$0xff]
      %v465 = vld [vmem:[%s2 + $0x40] sm:$0xff]
      %v466 = vld [vmem:[%s2 + $0x48] sm:$0xff]
      %v467 = vld [vmem:[%s2 + $0x50] sm:$0xff]
      %v468 = vld [vmem:[%s2 + $0x58] sm:$0xff]
      %v469 = vld [vmem:[%s2 + $0x60] sm:$0xff]
      %v470 = vld [vmem:[%s2 + $0x68] sm:$0xff]
      %v471 = vld [vmem:[%s2 + $0x70] sm:$0xff]
      %v472 = vld [vmem:[%s2 + $0x78] sm:$0xff]
      %v473 = vld [vmem:[%s2 + $0x80] sm:$0xff]
      %v474 = vld [vmem:[%s2 + $0x88] sm:$0xff]
      %v475 = vld [vmem:[%s5] sm:$0xff]
      %v476 = vld [vmem:[%s5 + $0x8] sm:$0xff]
      %v477 = vld [vmem:[%s5 + $0x10] sm:$0xff]
      %v478 = vld [vmem:[%s5 + $0x18] sm:$0xff]
      %v479 = vld [vmem:[%s5 + $0x20] sm:$0xff]
      %v480 = vld [vmem:[%s5 + $0x28] sm:$0xff]
      %v481 = vld [vmem:[%s5 + $0x30] sm:$0xff]
      %v482 = vld [vmem:[%s5 + $0x38] sm:$0xff]
      %v483 = vld [vmem:[%s5 + $0x40] sm:$0xff]
      %v484 = vld [vmem:[%s5 + $0x48] sm:$0xff]
      %v485 = vld [vmem:[%s5 + $0x50] sm:$0xff]
      %v486 = vld [vmem:[%s5 + $0x58] sm:$0xff]
      %v487 = vld [vmem:[%s5 + $0x60] sm:$0xff]
      %v488 = vld [vmem:[%s5 + $0x68] sm:$0xff]
      %v489 = vld [vmem:[%s5 + $0x70] sm:$0xff]
      %v490 = vld [vmem:[%s5 + $0x78] sm:$0xff]
      %v491 = vld [vmem:[%s5 + $0x80] sm:$0xff]
      %v492 = vld [vmem:[%s5 + $0x88] sm:$0xff]
      %vm493 = vcmask 523264
      %v495 = vsel %vm493, %v475, 0
      %v498 = vsel %vm493, %v476, 0
      %500 = vmatpush.msra.mxu0 0.0
      %501 = vmatpush.msra.mxu0 0.0
      %502 = vmatpush.msra.mxu0 0.0
      %503 = vmatpush.msra.mxu0 0.0
      %504 = vmatpush.msra.mxu0 0.0
      %505 = vmatpush.msra.mxu0 0.0
      %506 = vmatpush.msra.mxu0 0.0
      %507 = vmatpush.msra.mxu0 0.0
      %508 = vmatpush.msra.mxu0 %v456
      %509 = vmatpush.msra.mxu0 %v455
      %510 = vmatpush.msra.mxu0 %v454
      %511 = vmatpush.msra.mxu0 %v453
      %512 = vmatpush.msra.mxu0 %v452
      %513 = vmatpush.msra.mxu0 %v451
      %514 = vmatpush.msra.mxu0 %v450
      %515 = vmatpush.msra.mxu0 %v449
      %516 = vmatmul.f32.gmra.mxu0 %v495
      %v517 = vpop.f32.mrf.mxu0
      %v518 = vadd.f32 0.0, %v517
      %519 = vmatmul.f32.gmra.mxu0 %v498
      %v520 = vpop.f32.mrf.mxu0
      %v521 = vadd.f32 0.0, %v520
      %522 = vdwg.mxu0
      %v524 = vsel %vm493, %v477, 0
      %v527 = vsel %vm493, %v478, 0
      %529 = vmatpush.msra.mxu0 0.0
      %530 = vmatpush.msra.mxu0 0.0
      %531 = vmatpush.msra.mxu0 0.0
      %532 = vmatpush.msra.mxu0 0.0
      %533 = vmatpush.msra.mxu0 0.0
      %534 = vmatpush.msra.mxu0 0.0
      %535 = vmatpush.msra.mxu0 0.0
      %536 = vmatpush.msra.mxu0 0.0
      %537 = vmatpush.msra.mxu0 %v456
      %538 = vmatpush.msra.mxu0 %v455
      %539 = vmatpush.msra.mxu0 %v454
      %540 = vmatpush.msra.mxu0 %v453
      %541 = vmatpush.msra.mxu0 %v452
      %542 = vmatpush.msra.mxu0 %v451
      %543 = vmatpush.msra.mxu0 %v450
      %544 = vmatpush.msra.mxu0 %v449
      %545 = vmatmul.f32.gmra.mxu0 %v524
      %v546 = vpop.f32.mrf.mxu0
      %v547 = vadd.f32 0.0, %v546
      %548 = vmatmul.f32.gmra.mxu0 %v527
      %v549 = vpop.f32.mrf.mxu0
      %v550 = vadd.f32 0.0, %v549
      %551 = vdwg.mxu0
      %v553 = vsel %vm493, %v479, 0
      %v556 = vsel %vm493, %v480, 0
      %558 = vmatpush.msra.mxu0 0.0
      %559 = vmatpush.msra.mxu0 0.0
      %560 = vmatpush.msra.mxu0 0.0
      %561 = vmatpush.msra.mxu0 0.0
      %562 = vmatpush.msra.mxu0 0.0
      %563 = vmatpush.msra.mxu0 0.0
      %564 = vmatpush.msra.mxu0 0.0
      %565 = vmatpush.msra.mxu0 0.0
      %566 = vmatpush.msra.mxu0 %v456
      %567 = vmatpush.msra.mxu0 %v455
      %568 = vmatpush.msra.mxu0 %v454
      %569 = vmatpush.msra.mxu0 %v453
      %570 = vmatpush.msra.mxu0 %v452
      %571 = vmatpush.msra.mxu0 %v451
      %572 = vmatpush.msra.mxu0 %v450
      %573 = vmatpush.msra.mxu0 %v449
      %574 = vmatmul.f32.gmra.mxu0 %v553
      %v575 = vpop.f32.mrf.mxu0
      %v576 = vadd.f32 0.0, %v575
      %577 = vmatmul.f32.gmra.mxu0 %v556
      %v578 = vpop.f32.mrf.mxu0
      %v579 = vadd.f32 0.0, %v578
      %580 = vdwg.mxu0
      %v582 = vsel %vm493, %v481, 0
      %v585 = vsel %vm493, %v482, 0
      %587 = vmatpush.msra.mxu0 0.0
      %588 = vmatpush.msra.mxu0 0.0
      %589 = vmatpush.msra.mxu0 0.0
      %590 = vmatpush.msra.mxu0 0.0
      %591 = vmatpush.msra.mxu0 0.0
      %592 = vmatpush.msra.mxu0 0.0
      %593 = vmatpush.msra.mxu0 0.0
      %594 = vmatpush.msra.mxu0 0.0
      %595 = vmatpush.msra.mxu0 %v456
      %596 = vmatpush.msra.mxu0 %v455
      %597 = vmatpush.msra.mxu0 %v454
      %598 = vmatpush.msra.mxu0 %v453
      %599 = vmatpush.msra.mxu0 %v452
      %600 = vmatpush.msra.mxu0 %v451
      %601 = vmatpush.msra.mxu0 %v450
      %602 = vmatpush.msra.mxu0 %v449
      %603 = vmatmul.f32.gmra.mxu0 %v582
      %v604 = vpop.f32.mrf.mxu0
      %v605 = vadd.f32 0.0, %v604
      %606 = vmatmul.f32.gmra.mxu0 %v585
      %v607 = vpop.f32.mrf.mxu0
      %v608 = vadd.f32 0.0, %v607
      %609 = vdwg.mxu0
      %v611 = vsel %vm493, %v483, 0
      %v614 = vsel %vm493, %v484, 0
      %616 = vmatpush.msra.mxu0 0.0
      %617 = vmatpush.msra.mxu0 0.0
      %618 = vmatpush.msra.mxu0 0.0
      %619 = vmatpush.msra.mxu0 0.0
      %620 = vmatpush.msra.mxu0 0.0
      %621 = vmatpush.msra.mxu0 0.0
      %622 = vmatpush.msra.mxu0 0.0
      %623 = vmatpush.msra.mxu0 0.0
      %624 = vmatpush.msra.mxu0 %v456
      %625 = vmatpush.msra.mxu0 %v455
      %626 = vmatpush.msra.mxu0 %v454
      %627 = vmatpush.msra.mxu0 %v453
      %628 = vmatpush.msra.mxu0 %v452
      %629 = vmatpush.msra.mxu0 %v451
      %630 = vmatpush.msra.mxu0 %v450
      %631 = vmatpush.msra.mxu0 %v449
      %632 = vmatmul.f32.gmra.mxu0 %v611
      %v633 = vpop.f32.mrf.mxu0
      %v634 = vadd.f32 0.0, %v633
      %635 = vmatmul.f32.gmra.mxu0 %v614
      %v636 = vpop.f32.mrf.mxu0
      %v637 = vadd.f32 0.0, %v636
      %638 = vdwg.mxu0
      %v640 = vsel %vm493, %v485, 0
      %v643 = vsel %vm493, %v486, 0
      %645 = vmatpush.msra.mxu0 0.0
      %646 = vmatpush.msra.mxu0 0.0
      %647 = vmatpush.msra.mxu0 0.0
      %648 = vmatpush.msra.mxu0 0.0
      %649 = vmatpush.msra.mxu0 0.0
      %650 = vmatpush.msra.mxu0 0.0
      %651 = vmatpush.msra.mxu0 0.0
      %652 = vmatpush.msra.mxu0 0.0
      %653 = vmatpush.msra.mxu0 %v456
      %654 = vmatpush.msra.mxu0 %v455
      %655 = vmatpush.msra.mxu0 %v454
      %656 = vmatpush.msra.mxu0 %v453
      %657 = vmatpush.msra.mxu0 %v452
      %658 = vmatpush.msra.mxu0 %v451
      %659 = vmatpush.msra.mxu0 %v450
      %660 = vmatpush.msra.mxu0 %v449
      %661 = vmatmul.f32.gmra.mxu0 %v640
      %v662 = vpop.f32.mrf.mxu0
      %v663 = vadd.f32 0.0, %v662
      %664 = vmatmul.f32.gmra.mxu0 %v643
      %v665 = vpop.f32.mrf.mxu0
      %v666 = vadd.f32 0.0, %v665
      %667 = vdwg.mxu0
      %v669 = vsel %vm493, %v487, 0
      %v672 = vsel %vm493, %v488, 0
      %674 = vmatpush.msra.mxu0 0.0
      %675 = vmatpush.msra.mxu0 0.0
      %676 = vmatpush.msra.mxu0 0.0
      %677 = vmatpush.msra.mxu0 0.0
      %678 = vmatpush.msra.mxu0 0.0
      %679 = vmatpush.msra.mxu0 0.0
      %680 = vmatpush.msra.mxu0 0.0
      %681 = vmatpush.msra.mxu0 0.0
      %682 = vmatpush.msra.mxu0 %v456
      %683 = vmatpush.msra.mxu0 %v455
      %684 = vmatpush.msra.mxu0 %v454
      %685 = vmatpush.msra.mxu0 %v453
      %686 = vmatpush.msra.mxu0 %v452
      %687 = vmatpush.msra.mxu0 %v451
      %688 = vmatpush.msra.mxu0 %v450
      %689 = vmatpush.msra.mxu0 %v449
      %690 = vmatmul.f32.gmra.mxu0 %v669
      %v691 = vpop.f32.mrf.mxu0
      %v692 = vadd.f32 0.0, %v691
      %693 = vmatmul.f32.gmra.mxu0 %v672
      %v694 = vpop.f32.mrf.mxu0
      %v695 = vadd.f32 0.0, %v694
      %696 = vdwg.mxu0
      %v698 = vsel %vm493, %v489, 0
      %v701 = vsel %vm493, %v490, 0
      %703 = vmatpush.msra.mxu0 0.0
      %704 = vmatpush.msra.mxu0 0.0
      %705 = vmatpush.msra.mxu0 0.0
      %706 = vmatpush.msra.mxu0 0.0
      %707 = vmatpush.msra.mxu0 0.0
      %708 = vmatpush.msra.mxu0 0.0
      %709 = vmatpush.msra.mxu0 0.0
      %710 = vmatpush.msra.mxu0 0.0
      %711 = vmatpush.msra.mxu0 %v456
      %712 = vmatpush.msra.mxu0 %v455
      %713 = vmatpush.msra.mxu0 %v454
      %714 = vmatpush.msra.mxu0 %v453
      %715 = vmatpush.msra.mxu0 %v452
      %716 = vmatpush.msra.mxu0 %v451
      %717 = vmatpush.msra.mxu0 %v450
      %718 = vmatpush.msra.mxu0 %v449
      %719 = vmatmul.f32.gmra.mxu0 %v698
      %v720 = vpop.f32.mrf.mxu0
      %v721 = vadd.f32 0.0, %v720
      %722 = vmatmul.f32.gmra.mxu0 %v701
      %v723 = vpop.f32.mrf.mxu0
      %v724 = vadd.f32 0.0, %v723
      %725 = vdwg.mxu0
      %v727 = vsel %vm493, %v491, 0
      %v730 = vsel %vm493, %v492, 0
      %732 = vmatpush.msra.mxu0 0.0
      %733 = vmatpush.msra.mxu0 0.0
      %734 = vmatpush.msra.mxu0 0.0
      %735 = vmatpush.msra.mxu0 0.0
      %736 = vmatpush.msra.mxu0 0.0
      %737 = vmatpush.msra.mxu0 0.0
      %738 = vmatpush.msra.mxu0 0.0
      %739 = vmatpush.msra.mxu0 0.0
      %740 = vmatpush.msra.mxu0 %v456
      %741 = vmatpush.msra.mxu0 %v455
      %742 = vmatpush.msra.mxu0 %v454
      %743 = vmatpush.msra.mxu0 %v453
      %744 = vmatpush.msra.mxu0 %v452
      %745 = vmatpush.msra.mxu0 %v451
      %746 = vmatpush.msra.mxu0 %v450
      %747 = vmatpush.msra.mxu0 %v449
      %748 = vmatmul.f32.gmra.mxu0 %v727
      %v749 = vpop.f32.mrf.mxu0
      %v750 = vadd.f32 0.0, %v749
      %751 = vmatmul.f32.gmra.mxu0 %v730
      %v752 = vpop.f32.mrf.mxu0
      %v753 = vadd.f32 0.0, %v752
      %754 = vdwg.mxu0
      %757 = vrot.lane.b32.xlu0 %v547, 16
      %v758 = vpop.permute.xlu0 %757
      %759 = vrot.lane.b32.xlu0 %v550, 16
      %v760 = vpop.permute.xlu0 %759
      %765 = vrot.lane.b32.xlu0 %v576, 32
      %v766 = vpop.permute.xlu0 %765
      %767 = vrot.lane.b32.xlu0 %v579, 32
      %v768 = vpop.permute.xlu0 %767
      %773 = vrot.lane.b32.xlu0 %v605, 48
      %v774 = vpop.permute.xlu0 %773
      %775 = vrot.lane.b32.xlu0 %v608, 48
      %v776 = vpop.permute.xlu0 %775
      %781 = vrot.lane.b32.xlu0 %v634, 64
      %v782 = vpop.permute.xlu0 %781
      %783 = vrot.lane.b32.xlu0 %v637, 64
      %v784 = vpop.permute.xlu0 %783
      %789 = vrot.lane.b32.xlu0 %v663, 80
      %v790 = vpop.permute.xlu0 %789
      %791 = vrot.lane.b32.xlu0 %v666, 80
      %v792 = vpop.permute.xlu0 %791
      %797 = vrot.lane.b32.xlu0 %v692, 96
      %v798 = vpop.permute.xlu0 %797
      %799 = vrot.lane.b32.xlu0 %v695, 96
      %v800 = vpop.permute.xlu0 %799
      %805 = vrot.lane.b32.xlu0 %v721, 112
      %v806 = vpop.permute.xlu0 %805
      %807 = vrot.lane.b32.xlu0 %v724, 112
      %v808 = vpop.permute.xlu0 %807
      %vm811 = vcmask 130048
      %v812 = vsel %vm811, %v518, %v758
      %v813 = vsel %vm811, %v521, %v760
      %vm814 = vcmask 261120
      %v815 = vsel %vm814, %v812, %v766
      %v816 = vsel %vm814, %v813, %v768
      %vm817 = vcmask 392192
      %v818 = vsel %vm817, %v815, %v774
      %v819 = vsel %vm817, %v816, %v776
      %v820 = vsel %vm493, %v818, %v782
      %v821 = vsel %vm493, %v819, %v784
      %vm822 = vcmask 654336
      %v823 = vsel %vm822, %v820, %v790
      %v824 = vsel %vm822, %v821, %v792
      %vm825 = vcmask 785408
      %v826 = vsel %vm825, %v823, %v798
      %v827 = vsel %vm825, %v824, %v800
      %vm828 = vcmask 916480
      %v829 = vsel %vm828, %v826, %v806
      %v830 = vsel %vm828, %v827, %v808
      %v831 = vperm.slane %v329, 3
      %v833 = vsel %vm811, %v750, 0
      %v836 = vsel %vm811, %v753, 0
      %838 = vmatpush.msra.mxu0 %v472
      %839 = vmatpush.msra.mxu0 %v471
      %840 = vmatpush.msra.mxu0 %v470
      %841 = vmatpush.msra.mxu0 %v469
      %842 = vmatpush.msra.mxu0 %v468
      %843 = vmatpush.msra.mxu0 %v467
      %844 = vmatpush.msra.mxu0 %v466
      %845 = vmatpush.msra.mxu0 %v465
      %846 = vmatpush.msra.mxu0 %v464
      %847 = vmatpush.msra.mxu0 %v463
      %848 = vmatpush.msra.mxu0 %v462
      %849 = vmatpush.msra.mxu0 %v461
      %850 = vmatpush.msra.mxu0 %v460
      %851 = vmatpush.msra.mxu0 %v459
      %852 = vmatpush.msra.mxu0 %v458
      %853 = vmatpush.msra.mxu0 %v457
      %854 = vmatmul.f32.gmra.mxu0 %v829
      %v855 = vpop.f32.mrf.mxu0
      %v856 = vadd.f32 %v831, %v855
      %857 = vmatmul.f32.gmra.mxu0 %v830
      %v858 = vpop.f32.mrf.mxu0
      %v859 = vadd.f32 %v831, %v858
      %860 = vdwg.mxu0
      %861 = vmatpush.msra.mxu0 0.0
      %862 = vmatpush.msra.mxu0 0.0
      %863 = vmatpush.msra.mxu0 0.0
      %864 = vmatpush.msra.mxu0 0.0
      %865 = vmatpush.msra.mxu0 0.0
      %866 = vmatpush.msra.mxu0 0.0
      %867 = vmatpush.msra.mxu0 0.0
      %868 = vmatpush.msra.mxu0 0.0
      %869 = vmatpush.msra.mxu0 0.0
      %870 = vmatpush.msra.mxu0 0.0
      %871 = vmatpush.msra.mxu0 0.0
      %872 = vmatpush.msra.mxu0 0.0
      %873 = vmatpush.msra.mxu0 0.0
      %874 = vmatpush.msra.mxu0 0.0
      %875 = vmatpush.msra.mxu0 %v474
      %876 = vmatpush.msra.mxu0 %v473
      %877 = vmatmul.f32.gmra.mxu0 %v833
      %v878 = vpop.f32.mrf.mxu0
      %v879 = vadd.f32 %v856, %v878
      %880 = vmatmul.f32.gmra.mxu0 %v836
      %v881 = vpop.f32.mrf.mxu0
      %v882 = vadd.f32 %v859, %v881
      %883 = vdwg.mxu0
      %vm884 = vcmp.gt.f32.partialorder %v879, 0.0
      %vm885 = vcmp.gt.f32.partialorder %v882, 0.0
      %v886 = vmul.f32 %v879, 0.2
      %v887 = vmul.f32 %v882, 0.2
      %v888 = vsel %vm884, %v879, %v886
      %v889 = vsel %vm885, %v882, %v887
      %v890 = vperm.slane %v329, 4
      %v891 = vmul.f32 %v888, %v890
      %v892 = vmul.f32 %v889, %v890
      %v893 = vperm.slane %v329, 5
      %v894 = vadd.f32 %v891, %v893
      %v895 = vadd.f32 %v892, %v893
      %v896 = vld [vmem:[%s3] sm:$0xff]
      %v897 = vld [vmem:[%s3 + $0x8] sm:$0xff]
      %v898 = vld [vmem:[%s3 + $0x10] sm:$0xff]
      %v899 = vld [vmem:[%s3 + $0x18] sm:$0xff]
      %v900 = vld [vmem:[%s3 + $0x20] sm:$0xff]
      %v901 = vld [vmem:[%s3 + $0x28] sm:$0xff]
      %v902 = vld [vmem:[%s3 + $0x30] sm:$0xff]
      %v903 = vld [vmem:[%s3 + $0x38] sm:$0xff]
      %v904 = vld [vmem:[%s3 + $0x40] sm:$0xff]
      %v905 = vld [vmem:[%s3 + $0x48] sm:$0xff]
      %v906 = vld [vmem:[%s3 + $0x50] sm:$0xff]
      %v907 = vld [vmem:[%s3 + $0x58] sm:$0xff]
      %v908 = vld [vmem:[%s3 + $0x60] sm:$0xff]
      %v909 = vld [vmem:[%s3 + $0x68] sm:$0xff]
      %v910 = vld [vmem:[%s3 + $0x70] sm:$0xff]
      %v911 = vld [vmem:[%s3 + $0x78] sm:$0xff]
      %v912 = vld [vmem:[%s3 + $0x80] sm:$0xff]
      %v913 = vld [vmem:[%s3 + $0x88] sm:$0xff]
      %v914 = vld [vmem:[%s3 + $0x90] sm:$0xff]
      %v915 = vld [vmem:[%s3 + $0x98] sm:$0xff]
      %v916 = vld [vmem:[%s3 + $0xa0] sm:$0xff]
      %v917 = vld [vmem:[%s3 + $0xa8] sm:$0xff]
      %v918 = vld [vmem:[%s3 + $0xb0] sm:$0xff]
      %v919 = vld [vmem:[%s3 + $0xb8] sm:$0xff]
      %v920 = vld [vmem:[%s3 + $0xc0] sm:$0xff]
      %v921 = vld [vmem:[%s3 + $0xc8] sm:$0xff]
      %v922 = vld [vmem:[%s3 + $0xd0] sm:$0xff]
      %v923 = vld [vmem:[%s3 + $0xd8] sm:$0xff]
      %v924 = vld [vmem:[%s3 + $0xe0] sm:$0xff]
      %v925 = vld [vmem:[%s3 + $0xe8] sm:$0xff]
      %v926 = vld [vmem:[%s3 + $0xf0] sm:$0xff]
      %v927 = vld [vmem:[%s3 + $0xf8] sm:$0xff]
      %v928 = vld [vmem:[%s3 + $0x100] sm:$0xff]
      %v929 = vld [vmem:[%s3 + $0x108] sm:$0xff]
      %v930 = vld [vmem:[%s3 + $0x110] sm:$0xff]
      %v931 = vld [vmem:[%s3 + $0x118] sm:$0xff]
      %v932 = vld [vmem:[%s6] sm:$0xf]
      %v933 = vld [vmem:[%s6 + $0x4] sm:$0xf]
      %v934 = vld [vmem:[%s6 + $0x8] sm:$0xf]
      %v935 = vld [vmem:[%s6 + $0xc] sm:$0xf]
      %v936 = vld [vmem:[%s6 + $0x10] sm:$0xf]
      %v937 = vld [vmem:[%s6 + $0x14] sm:$0xf]
      %v938 = vld [vmem:[%s6 + $0x18] sm:$0xf]
      %v939 = vld [vmem:[%s6 + $0x1c] sm:$0xf]
      %v940 = vld [vmem:[%s6 + $0x20] sm:$0xf]
      %v942 = vsel %vm811, %v932, 0
      %944 = vmatpush.msra.mxu0 0.0
      %945 = vmatpush.msra.mxu0 0.0
      %946 = vmatpush.msra.mxu0 0.0
      %947 = vmatpush.msra.mxu0 0.0
      %948 = vmatpush.msra.mxu0 0.0
      %949 = vmatpush.msra.mxu0 0.0
      %950 = vmatpush.msra.mxu0 0.0
      %951 = vmatpush.msra.mxu0 0.0
      %952 = vmatpush.msra.mxu0 0.0
      %953 = vmatpush.msra.mxu0 0.0
      %954 = vmatpush.msra.mxu0 0.0
      %955 = vmatpush.msra.mxu0 0.0
      %956 = vmatpush.msra.mxu0 0.0
      %957 = vmatpush.msra.mxu0 0.0
      %958 = vmatpush.msra.mxu0 %v895
      %959 = vmatpush.msra.mxu0 %v894
      %960 = vmatmul.f32.gmra.mxu0 %v942
      %v961 = vpop.f32.mrf.mxu0
      %v962 = vadd.f32 0.0, %v961
      %963 = vdwg.mxu0
      %v965 = vsel %vm811, %v933, 0
      %967 = vmatpush.msra.mxu0 0.0
      %968 = vmatpush.msra.mxu0 0.0
      %969 = vmatpush.msra.mxu0 0.0
      %970 = vmatpush.msra.mxu0 0.0
      %971 = vmatpush.msra.mxu0 0.0
      %972 = vmatpush.msra.mxu0 0.0
      %973 = vmatpush.msra.mxu0 0.0
      %974 = vmatpush.msra.mxu0 0.0
      %975 = vmatpush.msra.mxu0 0.0
      %976 = vmatpush.msra.mxu0 0.0
      %977 = vmatpush.msra.mxu0 0.0
      %978 = vmatpush.msra.mxu0 0.0
      %979 = vmatpush.msra.mxu0 0.0
      %980 = vmatpush.msra.mxu0 0.0
      %981 = vmatpush.msra.mxu0 %v895
      %982 = vmatpush.msra.mxu0 %v894
      %983 = vmatmul.f32.gmra.mxu0 %v965
      %v984 = vpop.f32.mrf.mxu0
      %v985 = vadd.f32 0.0, %v984
      %986 = vdwg.mxu0
      %v988 = vsel %vm811, %v934, 0
      %990 = vmatpush.msra.mxu0 0.0
      %991 = vmatpush.msra.mxu0 0.0
      %992 = vmatpush.msra.mxu0 0.0
      %993 = vmatpush.msra.mxu0 0.0
      %994 = vmatpush.msra.mxu0 0.0
      %995 = vmatpush.msra.mxu0 0.0
      %996 = vmatpush.msra.mxu0 0.0
      %997 = vmatpush.msra.mxu0 0.0
      %998 = vmatpush.msra.mxu0 0.0
      %999 = vmatpush.msra.mxu0 0.0
      %1000 = vmatpush.msra.mxu0 0.0
      %1001 = vmatpush.msra.mxu0 0.0
      %1002 = vmatpush.msra.mxu0 0.0
      %1003 = vmatpush.msra.mxu0 0.0
      %1004 = vmatpush.msra.mxu0 %v895
      %1005 = vmatpush.msra.mxu0 %v894
      %1006 = vmatmul.f32.gmra.mxu0 %v988
      %v1007 = vpop.f32.mrf.mxu0
      %v1008 = vadd.f32 0.0, %v1007
      %1009 = vdwg.mxu0
      %v1011 = vsel %vm811, %v935, 0
      %1013 = vmatpush.msra.mxu0 0.0
      %1014 = vmatpush.msra.mxu0 0.0
      %1015 = vmatpush.msra.mxu0 0.0
      %1016 = vmatpush.msra.mxu0 0.0
      %1017 = vmatpush.msra.mxu0 0.0
      %1018 = vmatpush.msra.mxu0 0.0
      %1019 = vmatpush.msra.mxu0 0.0
      %1020 = vmatpush.msra.mxu0 0.0
      %1021 = vmatpush.msra.mxu0 0.0
      %1022 = vmatpush.msra.mxu0 0.0
      %1023 = vmatpush.msra.mxu0 0.0
      %1024 = vmatpush.msra.mxu0 0.0
      %1025 = vmatpush.msra.mxu0 0.0
      %1026 = vmatpush.msra.mxu0 0.0
      %1027 = vmatpush.msra.mxu0 %v895
      %1028 = vmatpush.msra.mxu0 %v894
      %1029 = vmatmul.f32.gmra.mxu0 %v1011
      %v1030 = vpop.f32.mrf.mxu0
      %v1031 = vadd.f32 0.0, %v1030
      %1032 = vdwg.mxu0
      %v1034 = vsel %vm811, %v936, 0
      %1036 = vmatpush.msra.mxu0 0.0
      %1037 = vmatpush.msra.mxu0 0.0
      %1038 = vmatpush.msra.mxu0 0.0
      %1039 = vmatpush.msra.mxu0 0.0
      %1040 = vmatpush.msra.mxu0 0.0
      %1041 = vmatpush.msra.mxu0 0.0
      %1042 = vmatpush.msra.mxu0 0.0
      %1043 = vmatpush.msra.mxu0 0.0
      %1044 = vmatpush.msra.mxu0 0.0
      %1045 = vmatpush.msra.mxu0 0.0
      %1046 = vmatpush.msra.mxu0 0.0
      %1047 = vmatpush.msra.mxu0 0.0
      %1048 = vmatpush.msra.mxu0 0.0
      %1049 = vmatpush.msra.mxu0 0.0
      %1050 = vmatpush.msra.mxu0 %v895
      %1051 = vmatpush.msra.mxu0 %v894
      %1052 = vmatmul.f32.gmra.mxu0 %v1034
      %v1053 = vpop.f32.mrf.mxu0
      %v1054 = vadd.f32 0.0, %v1053
      %1055 = vdwg.mxu0
      %v1057 = vsel %vm811, %v937, 0
      %1059 = vmatpush.msra.mxu0 0.0
      %1060 = vmatpush.msra.mxu0 0.0
      %1061 = vmatpush.msra.mxu0 0.0
      %1062 = vmatpush.msra.mxu0 0.0
      %1063 = vmatpush.msra.mxu0 0.0
      %1064 = vmatpush.msra.mxu0 0.0
      %1065 = vmatpush.msra.mxu0 0.0
      %1066 = vmatpush.msra.mxu0 0.0
      %1067 = vmatpush.msra.mxu0 0.0
      %1068 = vmatpush.msra.mxu0 0.0
      %1069 = vmatpush.msra.mxu0 0.0
      %1070 = vmatpush.msra.mxu0 0.0
      %1071 = vmatpush.msra.mxu0 0.0
      %1072 = vmatpush.msra.mxu0 0.0
      %1073 = vmatpush.msra.mxu0 %v895
      %1074 = vmatpush.msra.mxu0 %v894
      %1075 = vmatmul.f32.gmra.mxu0 %v1057
      %v1076 = vpop.f32.mrf.mxu0
      %v1077 = vadd.f32 0.0, %v1076
      %1078 = vdwg.mxu0
      %v1080 = vsel %vm811, %v938, 0
      %1082 = vmatpush.msra.mxu0 0.0
      %1083 = vmatpush.msra.mxu0 0.0
      %1084 = vmatpush.msra.mxu0 0.0
      %1085 = vmatpush.msra.mxu0 0.0
      %1086 = vmatpush.msra.mxu0 0.0
      %1087 = vmatpush.msra.mxu0 0.0
      %1088 = vmatpush.msra.mxu0 0.0
      %1089 = vmatpush.msra.mxu0 0.0
      %1090 = vmatpush.msra.mxu0 0.0
      %1091 = vmatpush.msra.mxu0 0.0
      %1092 = vmatpush.msra.mxu0 0.0
      %1093 = vmatpush.msra.mxu0 0.0
      %1094 = vmatpush.msra.mxu0 0.0
      %1095 = vmatpush.msra.mxu0 0.0
      %1096 = vmatpush.msra.mxu0 %v895
      %1097 = vmatpush.msra.mxu0 %v894
      %1098 = vmatmul.f32.gmra.mxu0 %v1080
      %v1099 = vpop.f32.mrf.mxu0
      %v1100 = vadd.f32 0.0, %v1099
      %1101 = vdwg.mxu0
      %v1103 = vsel %vm811, %v939, 0
      %1105 = vmatpush.msra.mxu0 0.0
      %1106 = vmatpush.msra.mxu0 0.0
      %1107 = vmatpush.msra.mxu0 0.0
      %1108 = vmatpush.msra.mxu0 0.0
      %1109 = vmatpush.msra.mxu0 0.0
      %1110 = vmatpush.msra.mxu0 0.0
      %1111 = vmatpush.msra.mxu0 0.0
      %1112 = vmatpush.msra.mxu0 0.0
      %1113 = vmatpush.msra.mxu0 0.0
      %1114 = vmatpush.msra.mxu0 0.0
      %1115 = vmatpush.msra.mxu0 0.0
      %1116 = vmatpush.msra.mxu0 0.0
      %1117 = vmatpush.msra.mxu0 0.0
      %1118 = vmatpush.msra.mxu0 0.0
      %1119 = vmatpush.msra.mxu0 %v895
      %1120 = vmatpush.msra.mxu0 %v894
      %1121 = vmatmul.f32.gmra.mxu0 %v1103
      %v1122 = vpop.f32.mrf.mxu0
      %v1123 = vadd.f32 0.0, %v1122
      %1124 = vdwg.mxu0
      %v1126 = vsel %vm811, %v940, 0
      %1128 = vmatpush.msra.mxu0 0.0
      %1129 = vmatpush.msra.mxu0 0.0
      %1130 = vmatpush.msra.mxu0 0.0
      %1131 = vmatpush.msra.mxu0 0.0
      %1132 = vmatpush.msra.mxu0 0.0
      %1133 = vmatpush.msra.mxu0 0.0
      %1134 = vmatpush.msra.mxu0 0.0
      %1135 = vmatpush.msra.mxu0 0.0
      %1136 = vmatpush.msra.mxu0 0.0
      %1137 = vmatpush.msra.mxu0 0.0
      %1138 = vmatpush.msra.mxu0 0.0
      %1139 = vmatpush.msra.mxu0 0.0
      %1140 = vmatpush.msra.mxu0 0.0
      %1141 = vmatpush.msra.mxu0 0.0
      %1142 = vmatpush.msra.mxu0 %v895
      %1143 = vmatpush.msra.mxu0 %v894
      %1144 = vmatmul.f32.gmra.mxu0 %v1126
      %v1145 = vpop.f32.mrf.mxu0
      %v1146 = vadd.f32 0.0, %v1145
      %1147 = vdwg.mxu0
      %1149 = vrot.lane.b32.xlu0 %v985, 32
      %v1150 = vpop.permute.xlu0 %1149
      %1153 = vrot.lane.b32.xlu0 %v1008, 64
      %v1154 = vpop.permute.xlu0 %1153
      %1157 = vrot.lane.b32.xlu0 %v1031, 96
      %v1158 = vpop.permute.xlu0 %1157
      %1161 = vrot.lane.b32.xlu0 %v1077, 32
      %v1162 = vpop.permute.xlu0 %1161
      %1165 = vrot.lane.b32.xlu0 %v1100, 64
      %v1166 = vpop.permute.xlu0 %1165
      %1169 = vrot.lane.b32.xlu0 %v1123, 96
      %v1170 = vpop.permute.xlu0 %1169
      %v1172 = vsel %vm814, %v962, %v1150
      %v1173 = vsel %vm493, %v1172, %v1154
      %v1174 = vsel %vm825, %v1173, %v1158
      %v1175 = vsel %vm814, %v1054, %v1162
      %v1176 = vsel %vm493, %v1175, %v1166
      %v1177 = vsel %vm825, %v1176, %v1170
      %v1178 = vperm.slane %v329, 6
      %v1180 = vsel %vm814, %v1146, 0
      %1182 = vmatpush.msra.mxu0 %v911
      %1183 = vmatpush.msra.mxu0 %v910
      %1184 = vmatpush.msra.mxu0 %v909
      %1185 = vmatpush.msra.mxu0 %v908
      %1186 = vmatpush.msra.mxu0 %v907
      %1187 = vmatpush.msra.mxu0 %v906
      %1188 = vmatpush.msra.mxu0 %v905
      %1189 = vmatpush.msra.mxu0 %v904
      %1190 = vmatpush.msra.mxu0 %v903
      %1191 = vmatpush.msra.mxu0 %v902
      %1192 = vmatpush.msra.mxu0 %v901
      %1193 = vmatpush.msra.mxu0 %v900
      %1194 = vmatpush.msra.mxu0 %v899
      %1195 = vmatpush.msra.mxu0 %v898
      %1196 = vmatpush.msra.mxu0 %v897
      %1197 = vmatpush.msra.mxu0 %v896
      %1198 = vmatmul.f32.gmra.mxu0 %v1174
      %v1199 = vpop.f32.mrf.mxu0
      %v1200 = vadd.f32 %v1178, %v1199
      %1201 = vdwg.mxu0
      %1202 = vmatpush.msra.mxu0 %v927
      %1203 = vmatpush.msra.mxu0 %v926
      %1204 = vmatpush.msra.mxu0 %v925
      %1205 = vmatpush.msra.mxu0 %v924
      %1206 = vmatpush.msra.mxu0 %v923
      %1207 = vmatpush.msra.mxu0 %v922
      %1208 = vmatpush.msra.mxu0 %v921
      %1209 = vmatpush.msra.mxu0 %v920
      %1210 = vmatpush.msra.mxu0 %v919
      %1211 = vmatpush.msra.mxu0 %v918
      %1212 = vmatpush.msra.mxu0 %v917
      %1213 = vmatpush.msra.mxu0 %v916
      %1214 = vmatpush.msra.mxu0 %v915
      %1215 = vmatpush.msra.mxu0 %v914
      %1216 = vmatpush.msra.mxu0 %v913
      %1217 = vmatpush.msra.mxu0 %v912
      %1218 = vmatmul.f32.gmra.mxu0 %v1177
      %v1219 = vpop.f32.mrf.mxu0
      %v1220 = vadd.f32 %v1200, %v1219
      %1221 = vdwg.mxu0
      %1222 = vmatpush.msra.mxu0 0.0
      %1223 = vmatpush.msra.mxu0 0.0
      %1224 = vmatpush.msra.mxu0 0.0
      %1225 = vmatpush.msra.mxu0 0.0
      %1226 = vmatpush.msra.mxu0 0.0
      %1227 = vmatpush.msra.mxu0 0.0
      %1228 = vmatpush.msra.mxu0 0.0
      %1229 = vmatpush.msra.mxu0 0.0
      %1230 = vmatpush.msra.mxu0 0.0
      %1231 = vmatpush.msra.mxu0 0.0
      %1232 = vmatpush.msra.mxu0 0.0
      %1233 = vmatpush.msra.mxu0 0.0
      %1234 = vmatpush.msra.mxu0 %v931
      %1235 = vmatpush.msra.mxu0 %v930
      %1236 = vmatpush.msra.mxu0 %v929
      %1237 = vmatpush.msra.mxu0 %v928
      %1238 = vmatmul.f32.gmra.mxu0 %v1180
      %v1239 = vpop.f32.mrf.mxu0
      %v1240 = vadd.f32 %v1220, %v1239
      %1241 = vdwg.mxu0
      %vm1242 = vcmp.gt.f32.partialorder %v1240, 0.0
      %v1243 = vmul.f32 %v1240, 0.2
      %v1244 = vsel %vm1242, %v1240, %v1243
      %v1245 = vperm.slane %v329, 7
      %v1246 = vmul.f32 %v1244, %v1245
      %v1247 = vperm.slane %v330, 0
      %v1248 = vadd.f32 %v1246, %v1247
      %v1249 = vld [vmem:[%s4] sm:$0xff]
      %v1250 = vld [vmem:[%s4 + $0x8] sm:$0xff]
      %v1251 = vld [vmem:[%s4 + $0x10] sm:$0xff]
      %v1252 = vld [vmem:[%s4 + $0x18] sm:$0xff]
      %v1253 = vld [vmem:[%s4 + $0x20] sm:$0xff]
      %v1254 = vld [vmem:[%s4 + $0x28] sm:$0xff]
      %v1255 = vld [vmem:[%s4 + $0x30] sm:$0xff]
      %v1256 = vld [vmem:[%s4 + $0x38] sm:$0xff]
      %v1257 = vld [vmem:[%s4 + $0x40] sm:$0xff]
      %v1258 = vld [vmem:[%s4 + $0x48] sm:$0xff]
      %v1259 = vld [vmem:[%s4 + $0x50] sm:$0xff]
      %v1260 = vld [vmem:[%s4 + $0x58] sm:$0xff]
      %v1261 = vld [vmem:[%s4 + $0x60] sm:$0xff]
      %v1262 = vld [vmem:[%s4 + $0x68] sm:$0xff]
      %v1263 = vld [vmem:[%s4 + $0x70] sm:$0xff]
      %v1264 = vld [vmem:[%s4 + $0x78] sm:$0xff]
      %v1265 = vld [vmem:[%s4 + $0x80] sm:$0xff]
      %v1266 = vld [vmem:[%s4 + $0x88] sm:$0xff]
      %v1267 = vld [vmem:[%s4 + $0x90] sm:$0xff]
      %v1268 = vld [vmem:[%s4 + $0x98] sm:$0xff]
      %v1269 = vld [vmem:[%s4 + $0xa0] sm:$0xff]
      %v1270 = vld [vmem:[%s4 + $0xa8] sm:$0xff]
      %v1271 = vld [vmem:[%s4 + $0xb0] sm:$0xff]
      %v1272 = vld [vmem:[%s4 + $0xb8] sm:$0xff]
      %v1273 = vld [vmem:[%s4 + $0xc0] sm:$0xff]
      %v1274 = vld [vmem:[%s4 + $0xc8] sm:$0xff]
      %v1275 = vld [vmem:[%s4 + $0xd0] sm:$0xff]
      %v1276 = vld [vmem:[%s4 + $0xd8] sm:$0xff]
      %v1277 = vld [vmem:[%s4 + $0xe0] sm:$0xff]
      %v1278 = vld [vmem:[%s4 + $0xe8] sm:$0xff]
      %v1279 = vld [vmem:[%s4 + $0xf0] sm:$0xff]
      %v1280 = vld [vmem:[%s4 + $0xf8] sm:$0xff]
      %v1281 = vld [vmem:[%s4 + $0x100] sm:$0xff]
      %v1282 = vld [vmem:[%s4 + $0x108] sm:$0xff]
      %v1283 = vld [vmem:[%s4 + $0x110] sm:$0xff]
      %v1284 = vld [vmem:[%s4 + $0x118] sm:$0xff]
      %v1285 = vld [vmem:[%s4 + $0x120] sm:$0xff]
      %v1286 = vld [vmem:[%s4 + $0x128] sm:$0xff]
      %v1287 = vld [vmem:[%s4 + $0x130] sm:$0xff]
      %v1288 = vld [vmem:[%s4 + $0x138] sm:$0xff]
      %v1289 = vld [vmem:[%s4 + $0x140] sm:$0xff]
      %v1290 = vld [vmem:[%s4 + $0x148] sm:$0xff]
      %v1291 = vld [vmem:[%s4 + $0x150] sm:$0xff]
      %v1292 = vld [vmem:[%s4 + $0x158] sm:$0xff]
      %v1293 = vld [vmem:[%s4 + $0x160] sm:$0xff]
      %v1294 = vld [vmem:[%s4 + $0x168] sm:$0xff]
      %v1295 = vld [vmem:[%s4 + $0x170] sm:$0xff]
      %v1296 = vld [vmem:[%s4 + $0x178] sm:$0xff]
      %v1297 = vld [vmem:[%s4 + $0x180] sm:$0xff]
      %v1298 = vld [vmem:[%s4 + $0x188] sm:$0xff]
      %v1299 = vld [vmem:[%s4 + $0x190] sm:$0xff]
      %v1300 = vld [vmem:[%s4 + $0x198] sm:$0xff]
      %v1301 = vld [vmem:[%s4 + $0x1a0] sm:$0xff]
      %v1302 = vld [vmem:[%s4 + $0x1a8] sm:$0xff]
      %v1303 = vld [vmem:[%s4 + $0x1b0] sm:$0xff]
      %v1304 = vld [vmem:[%s4 + $0x1b8] sm:$0xff]
      %v1305 = vld [vmem:[%s4 + $0x1c0] sm:$0xff]
      %v1306 = vld [vmem:[%s4 + $0x1c8] sm:$0xff]
      %v1307 = vld [vmem:[%s4 + $0x1d0] sm:$0xff]
      %v1308 = vld [vmem:[%s4 + $0x1d8] sm:$0xff]
      %v1309 = vld [vmem:[%s4 + $0x1e0] sm:$0xff]
      %v1310 = vld [vmem:[%s4 + $0x1e8] sm:$0xff]
      %v1311 = vld [vmem:[%s4 + $0x1f0] sm:$0xff]
      %v1312 = vld [vmem:[%s4 + $0x1f8] sm:$0xff]
      %v1313 = vld [vmem:[%s4 + $0x200] sm:$0xff]
      %v1314 = vld [vmem:[%s4 + $0x208] sm:$0xff]
      %v1315 = vld [vmem:[%s4 + $0x210] sm:$0xff]
      %v1316 = vld [vmem:[%s4 + $0x218] sm:$0xff]
      %v1317 = vld [vmem:[%s4 + $0x220] sm:$0xff]
      %v1318 = vld [vmem:[%s4 + $0x228] sm:$0xff]
      %v1319 = vld [vmem:[%s4 + $0x230] sm:$0xff]
      %v1320 = vld [vmem:[%s4 + $0x238] sm:$0xff]
      %v1321 = vld [vmem:[%s7] sm:$0x1]
      %v1322 = vld [vmem:[%s7 + $0x1] sm:$0x1]
      %v1323 = vld [vmem:[%s7 + $0x2] sm:$0x1]
      %v1324 = vld [vmem:[%s7 + $0x3] sm:$0x1]
      %v1325 = vld [vmem:[%s7 + $0x4] sm:$0x1]
      %v1326 = vld [vmem:[%s7 + $0x5] sm:$0x1]
      %v1327 = vld [vmem:[%s7 + $0x6] sm:$0x1]
      %v1328 = vld [vmem:[%s7 + $0x7] sm:$0x1]
      %v1329 = vld [vmem:[%s7 + $0x8] sm:$0x1]
      %vm1330 = vcmask 31744
      %v1332 = vsel %vm1330, %v1321, 0
      %v1335 = vsel %vm370, %v1248, 0
      %1337 = vmatpush.msra.mxu0 0.0
      %1338 = vmatpush.msra.mxu0 0.0
      %1339 = vmatpush.msra.mxu0 0.0
      %1340 = vmatpush.msra.mxu0 0.0
      %1341 = vmatpush.msra.mxu0 0.0
      %1342 = vmatpush.msra.mxu0 0.0
      %1343 = vmatpush.msra.mxu0 0.0
      %1344 = vmatpush.msra.mxu0 0.0
      %1345 = vmatpush.msra.mxu0 0.0
      %1346 = vmatpush.msra.mxu0 0.0
      %1347 = vmatpush.msra.mxu0 0.0
      %1348 = vmatpush.msra.mxu0 0.0
      %1349 = vmatpush.msra.mxu0 0.0
      %1350 = vmatpush.msra.mxu0 0.0
      %1351 = vmatpush.msra.mxu0 0.0
      %1352 = vmatpush.msra.mxu0 %v1335
      %1353 = vmatmul.f32.gmra.mxu0 %v1332
      %v1354 = vpop.f32.mrf.mxu0
      %v1355 = vadd.f32 0.0, %v1354
      %1356 = vdwg.mxu0
      %v1358 = vsel %vm1330, %v1322, 0
      %1360 = vmatpush.msra.mxu0 0.0
      %1361 = vmatpush.msra.mxu0 0.0
      %1362 = vmatpush.msra.mxu0 0.0
      %1363 = vmatpush.msra.mxu0 0.0
      %1364 = vmatpush.msra.mxu0 0.0
      %1365 = vmatpush.msra.mxu0 0.0
      %1366 = vmatpush.msra.mxu0 0.0
      %1367 = vmatpush.msra.mxu0 0.0
      %1368 = vmatpush.msra.mxu0 0.0
      %1369 = vmatpush.msra.mxu0 0.0
      %1370 = vmatpush.msra.mxu0 0.0
      %1371 = vmatpush.msra.mxu0 0.0
      %1372 = vmatpush.msra.mxu0 0.0
      %1373 = vmatpush.msra.mxu0 0.0
      %1374 = vmatpush.msra.mxu0 0.0
      %1375 = vmatpush.msra.mxu0 %v1335
      %1376 = vmatmul.f32.gmra.mxu0 %v1358
      %v1377 = vpop.f32.mrf.mxu0
      %v1378 = vadd.f32 0.0, %v1377
      %1379 = vdwg.mxu0
      %v1381 = vsel %vm1330, %v1323, 0
      %1383 = vmatpush.msra.mxu0 0.0
      %1384 = vmatpush.msra.mxu0 0.0
      %1385 = vmatpush.msra.mxu0 0.0
      %1386 = vmatpush.msra.mxu0 0.0
      %1387 = vmatpush.msra.mxu0 0.0
      %1388 = vmatpush.msra.mxu0 0.0
      %1389 = vmatpush.msra.mxu0 0.0
      %1390 = vmatpush.msra.mxu0 0.0
      %1391 = vmatpush.msra.mxu0 0.0
      %1392 = vmatpush.msra.mxu0 0.0
      %1393 = vmatpush.msra.mxu0 0.0
      %1394 = vmatpush.msra.mxu0 0.0
      %1395 = vmatpush.msra.mxu0 0.0
      %1396 = vmatpush.msra.mxu0 0.0
      %1397 = vmatpush.msra.mxu0 0.0
      %1398 = vmatpush.msra.mxu0 %v1335
      %1399 = vmatmul.f32.gmra.mxu0 %v1381
      %v1400 = vpop.f32.mrf.mxu0
      %v1401 = vadd.f32 0.0, %v1400
      %1402 = vdwg.mxu0
      %v1404 = vsel %vm1330, %v1324, 0
      %1406 = vmatpush.msra.mxu0 0.0
      %1407 = vmatpush.msra.mxu0 0.0
      %1408 = vmatpush.msra.mxu0 0.0
      %1409 = vmatpush.msra.mxu0 0.0
      %1410 = vmatpush.msra.mxu0 0.0
      %1411 = vmatpush.msra.mxu0 0.0
      %1412 = vmatpush.msra.mxu0 0.0
      %1413 = vmatpush.msra.mxu0 0.0
      %1414 = vmatpush.msra.mxu0 0.0
      %1415 = vmatpush.msra.mxu0 0.0
      %1416 = vmatpush.msra.mxu0 0.0
      %1417 = vmatpush.msra.mxu0 0.0
      %1418 = vmatpush.msra.mxu0 0.0
      %1419 = vmatpush.msra.mxu0 0.0
      %1420 = vmatpush.msra.mxu0 0.0
      %1421 = vmatpush.msra.mxu0 %v1335
      %1422 = vmatmul.f32.gmra.mxu0 %v1404
      %v1423 = vpop.f32.mrf.mxu0
      %v1424 = vadd.f32 0.0, %v1423
      %1425 = vdwg.mxu0
      %v1427 = vsel %vm1330, %v1325, 0
      %1429 = vmatpush.msra.mxu0 0.0
      %1430 = vmatpush.msra.mxu0 0.0
      %1431 = vmatpush.msra.mxu0 0.0
      %1432 = vmatpush.msra.mxu0 0.0
      %1433 = vmatpush.msra.mxu0 0.0
      %1434 = vmatpush.msra.mxu0 0.0
      %1435 = vmatpush.msra.mxu0 0.0
      %1436 = vmatpush.msra.mxu0 0.0
      %1437 = vmatpush.msra.mxu0 0.0
      %1438 = vmatpush.msra.mxu0 0.0
      %1439 = vmatpush.msra.mxu0 0.0
      %1440 = vmatpush.msra.mxu0 0.0
      %1441 = vmatpush.msra.mxu0 0.0
      %1442 = vmatpush.msra.mxu0 0.0
      %1443 = vmatpush.msra.mxu0 0.0
      %1444 = vmatpush.msra.mxu0 %v1335
      %1445 = vmatmul.f32.gmra.mxu0 %v1427
      %v1446 = vpop.f32.mrf.mxu0
      %v1447 = vadd.f32 0.0, %v1446
      %1448 = vdwg.mxu0
      %v1450 = vsel %vm1330, %v1326, 0
      %1452 = vmatpush.msra.mxu0 0.0
      %1453 = vmatpush.msra.mxu0 0.0
      %1454 = vmatpush.msra.mxu0 0.0
      %1455 = vmatpush.msra.mxu0 0.0
      %1456 = vmatpush.msra.mxu0 0.0
      %1457 = vmatpush.msra.mxu0 0.0
      %1458 = vmatpush.msra.mxu0 0.0
      %1459 = vmatpush.msra.mxu0 0.0
      %1460 = vmatpush.msra.mxu0 0.0
      %1461 = vmatpush.msra.mxu0 0.0
      %1462 = vmatpush.msra.mxu0 0.0
      %1463 = vmatpush.msra.mxu0 0.0
      %1464 = vmatpush.msra.mxu0 0.0
      %1465 = vmatpush.msra.mxu0 0.0
      %1466 = vmatpush.msra.mxu0 0.0
      %1467 = vmatpush.msra.mxu0 %v1335
      %1468 = vmatmul.f32.gmra.mxu0 %v1450
      %v1469 = vpop.f32.mrf.mxu0
      %v1470 = vadd.f32 0.0, %v1469
      %1471 = vdwg.mxu0
      %v1473 = vsel %vm1330, %v1327, 0
      %1475 = vmatpush.msra.mxu0 0.0
      %1476 = vmatpush.msra.mxu0 0.0
      %1477 = vmatpush.msra.mxu0 0.0
      %1478 = vmatpush.msra.mxu0 0.0
      %1479 = vmatpush.msra.mxu0 0.0
      %1480 = vmatpush.msra.mxu0 0.0
      %1481 = vmatpush.msra.mxu0 0.0
      %1482 = vmatpush.msra.mxu0 0.0
      %1483 = vmatpush.msra.mxu0 0.0
      %1484 = vmatpush.msra.mxu0 0.0
      %1485 = vmatpush.msra.mxu0 0.0
      %1486 = vmatpush.msra.mxu0 0.0
      %1487 = vmatpush.msra.mxu0 0.0
      %1488 = vmatpush.msra.mxu0 0.0
      %1489 = vmatpush.msra.mxu0 0.0
      %1490 = vmatpush.msra.mxu0 %v1335
      %1491 = vmatmul.f32.gmra.mxu0 %v1473
      %v1492 = vpop.f32.mrf.mxu0
      %v1493 = vadd.f32 0.0, %v1492
      %1494 = vdwg.mxu0
      %v1496 = vsel %vm1330, %v1328, 0
      %1498 = vmatpush.msra.mxu0 0.0
      %1499 = vmatpush.msra.mxu0 0.0
      %1500 = vmatpush.msra.mxu0 0.0
      %1501 = vmatpush.msra.mxu0 0.0
      %1502 = vmatpush.msra.mxu0 0.0
      %1503 = vmatpush.msra.mxu0 0.0
      %1504 = vmatpush.msra.mxu0 0.0
      %1505 = vmatpush.msra.mxu0 0.0
      %1506 = vmatpush.msra.mxu0 0.0
      %1507 = vmatpush.msra.mxu0 0.0
      %1508 = vmatpush.msra.mxu0 0.0
      %1509 = vmatpush.msra.mxu0 0.0
      %1510 = vmatpush.msra.mxu0 0.0
      %1511 = vmatpush.msra.mxu0 0.0
      %1512 = vmatpush.msra.mxu0 0.0
      %1513 = vmatpush.msra.mxu0 %v1335
      %1514 = vmatmul.f32.gmra.mxu0 %v1496
      %v1515 = vpop.f32.mrf.mxu0
      %v1516 = vadd.f32 0.0, %v1515
      %1517 = vdwg.mxu0
      %v1519 = vsel %vm1330, %v1329, 0
      %1521 = vmatpush.msra.mxu0 0.0
      %1522 = vmatpush.msra.mxu0 0.0
      %1523 = vmatpush.msra.mxu0 0.0
      %1524 = vmatpush.msra.mxu0 0.0
      %1525 = vmatpush.msra.mxu0 0.0
      %1526 = vmatpush.msra.mxu0 0.0
      %1527 = vmatpush.msra.mxu0 0.0
      %1528 = vmatpush.msra.mxu0 0.0
      %1529 = vmatpush.msra.mxu0 0.0
      %1530 = vmatpush.msra.mxu0 0.0
      %1531 = vmatpush.msra.mxu0 0.0
      %1532 = vmatpush.msra.mxu0 0.0
      %1533 = vmatpush.msra.mxu0 0.0
      %1534 = vmatpush.msra.mxu0 0.0
      %1535 = vmatpush.msra.mxu0 0.0
      %1536 = vmatpush.msra.mxu0 %v1335
      %1537 = vmatmul.f32.gmra.mxu0 %v1519
      %v1538 = vpop.f32.mrf.mxu0
      %v1539 = vadd.f32 0.0, %v1538
      %1540 = vdwg.mxu0
      %1542 = vrot.lane.b32.xlu0 %v1378, 64
      %v1543 = vpop.permute.xlu0 %1542
      %1546 = vrot.lane.b32.xlu0 %v1424, 64
      %v1547 = vpop.permute.xlu0 %1546
      %1550 = vrot.lane.b32.xlu0 %v1470, 64
      %v1551 = vpop.permute.xlu0 %1550
      %1554 = vrot.lane.b32.xlu0 %v1516, 64
      %v1555 = vpop.permute.xlu0 %1554
      %v1557 = vsel %vm493, %v1355, %v1543
      %v1558 = vsel %vm493, %v1401, %v1547
      %v1559 = vsel %vm493, %v1447, %v1551
      %v1560 = vsel %vm493, %v1493, %v1555
      %v1562 = vrot.slane %v330, 1
      %v1565 = vsel %vm493, %v1539, 0
      %1567 = vmatpush.msra.mxu0 %v1264
      %1568 = vmatpush.msra.mxu0 %v1263
      %1569 = vmatpush.msra.mxu0 %v1262
      %1570 = vmatpush.msra.mxu0 %v1261
      %1571 = vmatpush.msra.mxu0 %v1260
      %1572 = vmatpush.msra.mxu0 %v1259
      %1573 = vmatpush.msra.mxu0 %v1258
      %1574 = vmatpush.msra.mxu0 %v1257
      %1575 = vmatpush.msra.mxu0 %v1256
      %1576 = vmatpush.msra.mxu0 %v1255
      %1577 = vmatpush.msra.mxu0 %v1254
      %1578 = vmatpush.msra.mxu0 %v1253
      %1579 = vmatpush.msra.mxu0 %v1252
      %1580 = vmatpush.msra.mxu0 %v1251
      %1581 = vmatpush.msra.mxu0 %v1250
      %1582 = vmatpush.msra.mxu0 %v1249
      %1583 = vmatmul.f32.gmra.mxu0 %v1557
      %v1584 = vpop.f32.mrf.mxu0
      %v1585 = vadd.f32 %v1562, %v1584
      %1586 = vdwg.mxu0
      %1587 = vmatpush.msra.mxu0 %v1280
      %1588 = vmatpush.msra.mxu0 %v1279
      %1589 = vmatpush.msra.mxu0 %v1278
      %1590 = vmatpush.msra.mxu0 %v1277
      %1591 = vmatpush.msra.mxu0 %v1276
      %1592 = vmatpush.msra.mxu0 %v1275
      %1593 = vmatpush.msra.mxu0 %v1274
      %1594 = vmatpush.msra.mxu0 %v1273
      %1595 = vmatpush.msra.mxu0 %v1272
      %1596 = vmatpush.msra.mxu0 %v1271
      %1597 = vmatpush.msra.mxu0 %v1270
      %1598 = vmatpush.msra.mxu0 %v1269
      %1599 = vmatpush.msra.mxu0 %v1268
      %1600 = vmatpush.msra.mxu0 %v1267
      %1601 = vmatpush.msra.mxu0 %v1266
      %1602 = vmatpush.msra.mxu0 %v1265
      %1603 = vmatmul.f32.gmra.mxu0 %v1558
      %v1604 = vpop.f32.mrf.mxu0
      %v1605 = vadd.f32 %v1585, %v1604
      %1606 = vdwg.mxu0
      %1607 = vmatpush.msra.mxu0 %v1296
      %1608 = vmatpush.msra.mxu0 %v1295
      %1609 = vmatpush.msra.mxu0 %v1294
      %1610 = vmatpush.msra.mxu0 %v1293
      %1611 = vmatpush.msra.mxu0 %v1292
      %1612 = vmatpush.msra.mxu0 %v1291
      %1613 = vmatpush.msra.mxu0 %v1290
      %1614 = vmatpush.msra.mxu0 %v1289
      %1615 = vmatpush.msra.mxu0 %v1288
      %1616 = vmatpush.msra.mxu0 %v1287
      %1617 = vmatpush.msra.mxu0 %v1286
      %1618 = vmatpush.msra.mxu0 %v1285
      %1619 = vmatpush.msra.mxu0 %v1284
      %1620 = vmatpush.msra.mxu0 %v1283
      %1621 = vmatpush.msra.mxu0 %v1282
      %1622 = vmatpush.msra.mxu0 %v1281
      %1623 = vmatmul.f32.gmra.mxu0 %v1559
      %v1624 = vpop.f32.mrf.mxu0
      %v1625 = vadd.f32 %v1605, %v1624
      %1626 = vdwg.mxu0
      %1627 = vmatpush.msra.mxu0 %v1312
      %1628 = vmatpush.msra.mxu0 %v1311
      %1629 = vmatpush.msra.mxu0 %v1310
      %1630 = vmatpush.msra.mxu0 %v1309
      %1631 = vmatpush.msra.mxu0 %v1308
      %1632 = vmatpush.msra.mxu0 %v1307
      %1633 = vmatpush.msra.mxu0 %v1306
      %1634 = vmatpush.msra.mxu0 %v1305
      %1635 = vmatpush.msra.mxu0 %v1304
      %1636 = vmatpush.msra.mxu0 %v1303
      %1637 = vmatpush.msra.mxu0 %v1302
      %1638 = vmatpush.msra.mxu0 %v1301
      %1639 = vmatpush.msra.mxu0 %v1300
      %1640 = vmatpush.msra.mxu0 %v1299
      %1641 = vmatpush.msra.mxu0 %v1298
      %1642 = vmatpush.msra.mxu0 %v1297
      %1643 = vmatmul.f32.gmra.mxu0 %v1560
      %v1644 = vpop.f32.mrf.mxu0
      %v1645 = vadd.f32 %v1625, %v1644
      %1646 = vdwg.mxu0
      %1647 = vmatpush.msra.mxu0 0.0
      %1648 = vmatpush.msra.mxu0 0.0
      %1649 = vmatpush.msra.mxu0 0.0
      %1650 = vmatpush.msra.mxu0 0.0
      %1651 = vmatpush.msra.mxu0 0.0
      %1652 = vmatpush.msra.mxu0 0.0
      %1653 = vmatpush.msra.mxu0 0.0
      %1654 = vmatpush.msra.mxu0 0.0
      %1655 = vmatpush.msra.mxu0 %v1320
      %1656 = vmatpush.msra.mxu0 %v1319
      %1657 = vmatpush.msra.mxu0 %v1318
      %1658 = vmatpush.msra.mxu0 %v1317
      %1659 = vmatpush.msra.mxu0 %v1316
      %1660 = vmatpush.msra.mxu0 %v1315
      %1661 = vmatpush.msra.mxu0 %v1314
      %1662 = vmatpush.msra.mxu0 %v1313
      %1663 = vmatmul.f32.gmra.mxu0 %v1565
      %v1664 = vpop.f32.mrf.mxu0
      %v1665 = vadd.f32 %v1645, %v1664
      %1666 = vdwg.mxu0
      %vm1667 = vcmp.gt.f32.partialorder %v1665, 0.0
      %v1668 = vmul.f32 %v1665, 0.2
      %v1669 = vsel %vm1667, %v1665, %v1668
      %v1670 = vrot.slane %v330, 2
      %v1672 = vmul.f32 %v1669, %v1670
      %v1673 = vrot.slane %v330, 3
      %v1675 = vadd.f32 %v1672, %v1673
      %v1676 = vrot.slane %v330, 4
      %v1678 = vmul.f32 %v1675, %v1676
      %vm1679 = vcmask 1040384
      %v1680 = vsel %vm1679, %v1678, 0.0
      %1681 = vadd.xlane.f32.xlu0 %v1680
      %v1682 = vpop.xlane.xlu0 %1681
      %v1683 = vrot.slane %v330, 5
      %v1685 = vadd.f32 %v1682, %v1683
      %v1686 = vand.u32 2147483647, %v1685
      %v1687 = vsub.f32 0.0, %v1686
      %v1688 = vmul.f32 %v1687, 1.442695
      %v1689 = vpow.pop %v1688
      %vm1690 = vcmp.ge.f32.partialorder %v1685, 0.0
      %v1691 = vadd.f32 %v1689, 1.0
      %v1692 = vrcp.pop %v1691
      %v1693 = vmul.f32 %v1691, %v1692
      %v1694 = vsub.f32 1.0, %v1693
      %v1695 = vmul.f32 %v1692, %v1694
      %v1696 = vadd.f32 %v1692, %v1695
      %vm1697 = vweird.f32 %v1691
      %vm1698 = vweird.f32 %v1692
      %vm1699 = vmor %vm1697, %vm1698
      %v1700 = vsel %vm1699, %v1692, %v1696
      %v1701 = vand.u32 2147483647, %v1691
      %vm1702 = vcmp.eq.f32.partialorder %v1701, 8.507059e+37
      %v1703 = vand.u32 %v1691, 2147483648
      %v1704 = vor.u32 1.1754944e-38, %v1703
      %v1705 = vsel %vm1702, %v1704, %v1700
      %v1706 = vmul.f32 1.0, %v1705
      %v1707 = vmul.f32 %v1689, %v1705
      %v1708 = vsel %vm1690, %v1706, %v1707
      %vm1709 = vcmask 0
      %1710 = vst.msk [vmem:[%s328] sm:$0x1] %vm1709, %v1708
      %p1711 = scmp.lt.s32.totalorder %s20, 1
      %s1712 = scalar_select %p1711, %s20, 1
      %s1713 = scalar_lea.vmem %s9, %s1712
      // Predicated region
      $region57: #{discriminator_forward.1} parent=55 // pred_check
        %p1714 = pneg %p232
      $region58: #{discriminator_forward.1} parent=55 // pred_check_branch
        %1716 = sbr.rel (%p1714) target = $region60
      $region59: #{discriminator_forward.1} parent=55 // pred_region
        _
      $region60: #{discriminator_forward.1} parent=55 // pred_fallthru
        _
    $region56: #{discriminator_forward.1} parent=5 // pred_fallthru
      _
    %p1717 = scmp.le.s32.totalorder 2, %s15
    // Predicated region
    $region61: #{discriminator_forward.1} parent=5 // pred_check
      %p1718 = pneg %p1717
    $region62: #{discriminator_forward.1} parent=5 // pred_check_branch
      %1720 = sbr.rel (%p1718) target = $region64
    $region63: #{discriminator_forward.1} parent=5 // pred_region
      %s1721 = ssub.s32 %s15, 2
      // Predicated region
      $region65: #{discriminator_forward.1} parent=63 // pred_check
        %p1722 = pneg %p238
      $region66: #{discriminator_forward.1} parent=63 // pred_check_branch
        %1724 = sbr.rel (%p1722) target = $region68
      $region67: #{discriminator_forward.1} parent=63 // pred_region
        %p1725 = scmp.lt.s32.totalorder %s21, 1
        %s1726 = scalar_select %p1725, %s21, 1
        %s1727 = scalar_lea.vmem %s9, %s1726
      $region68: #{discriminator_forward.1} parent=63 // pred_fallthru
        _
    $region64: #{discriminator_forward.1} parent=5 // pred_fallthru
      _
  $region6: #{discriminator_forward.1} parent=0 // loop_footer
    %s19 = sadd.s32 1, %s15
  $region7: #{discriminator_forward.1} parent=0 // loop_footer_branch
    %14 = sbr.rel target = $region3
  $region8: #{discriminator_forward.1} parent=0 // loop_exit
    _

</llo_original>
